<compile_context>
chip_gen: v7x
topology: tpu7x:2x2x1
jax: 0.10.0
libtpu: 0.0.40
codegen_flags: <defaults>
</compile_context>

<pallas_src>
import jax
import jax.numpy as jnp
from jax.experimental import pallas as pl
from jax.experimental.pallas import tpu as pltpu


_LANE = 128      # TPU lane width; hidden dims are padded to multiples of this
_TILE_M = 512    # batch tile for the large-batch (gridded) path


def critic_kernel(xu_ref,
                  w1_ref, b1_ref,
                  w2_ref, b2_ref,
                  w3_ref, b3_ref,
                  w4_ref, b4_ref,
                  w5_ref, b5_ref,
                  w6_ref, b6_ref,
                  o_ref):
    """6-layer relu MLP; all hidden/output widths pre-padded to 128 lanes."""

    def layer(h_bf16, w_ref, b_ref):
        # bf16 x bf16 -> f32 accumulate on the MXU; one bf16 cast per layer.
        acc = jnp.dot(h_bf16, w_ref[...], preferred_element_type=jnp.float32)
        return jax.nn.relu(acc + b_ref[...]).astype(jnp.bfloat16)

    h = xu_ref[...].astype(jnp.bfloat16)
    h = layer(h, w1_ref, b1_ref)
    h = layer(h, w2_ref, b2_ref)
    h = layer(h, w3_ref, b3_ref)
    h = layer(h, w4_ref, b4_ref)
    h = layer(h, w5_ref, b5_ref)
    # Final layer: linear Q head, padded to 128 output lanes (column 0 = Q).
    q = jnp.dot(h, w6_ref[...], preferred_element_type=jnp.float32) + b6_ref[...]
    o_ref[...] = q.astype(o_ref.dtype)


def prepare_critic_params(params):
    """One-time prep: zero-pad widths to 128-lane multiples, cast W to bf16.

    params: [(W1, b1), ..., (W6, b6)] with W (in_features, out_features) f32
    and b (1, out_features) f32; W1 has in_features = state_dim + action_dim.
    Returns a flat list [W1p, b1p, ..., W6p, b6p] ready for the kernel.
    Zero-padding is exact: padded activation columns are relu(0) = 0 and the
    padded weight rows/cols contribute nothing.
    """
    prepared = []
    for i, (w, b) in enumerate(params):
        fan_in, fan_out = w.shape
        in_pad = 0 if i == 0 else (-fan_in) % _LANE   # layer-1 K stays sd+ad
        out_pad = (-fan_out) % _LANE
        w_p = jnp.pad(w, ((0, in_pad), (0, out_pad))).astype(jnp.bfloat16)
        b_p = jnp.pad(b, ((0, 0), (0, out_pad))).astype(jnp.float32)
        prepared += [w_p, b_p]
    return prepared


def _batch_axis_semantics():
    """CORE_PARALLEL only changes codegen on v7x (2 TCs); plain parallel elsewhere."""
    try:
        kind = jax.devices()[0].device_kind.lower()
    except Exception:
        kind = ""
    if "v7" in kind or "7x" in kind:
        return (pltpu.CORE_PARALLEL,)
    return ("parallel",)


def critic_forward(x, u, prepared_params):
    """x: (B, state_dim) f32, u: (B, action_dim) f32 -> Q values (B, 1) f32."""
    batch = x.shape[0]
    xu = jnp.concatenate([x, u], axis=-1)          # concat in the wrapper (free)
    k = xu.shape[1]
    n_w = len(prepared_params)
    q_lanes = prepared_params[-1].shape[-1]        # padded Q-head width (128)

    vmem = pl.BlockSpec(memory_space=pltpu.MemorySpace.VMEM)
    cparams = dict(vmem_limit_bytes=32 * 1024 * 1024)

    if batch <= _TILE_M:
        bp = max(8, -(-batch // 8) * 8)            # pad batch to sublane multiple
        grid = None
    else:
        bp = -(-batch // _TILE_M) * _TILE_M        # pad batch to tile multiple
        grid = (bp // _TILE_M,)
    pad = bp - batch
    if pad:
        xu = jnp.pad(xu, ((0, pad), (0, 0)))

    out_shape = jax.ShapeDtypeStruct((bp, q_lanes), jnp.float32)

    if grid is None:
        # Tiny batch: whole problem lives in VMEM, single kernel invocation.
        q = pl.pallas_call(
            critic_kernel,
            out_shape=out_shape,
            in_specs=[vmem] * (1 + n_w),
            out_specs=vmem,
            compiler_params=pltpu.CompilerParams(**cparams),
        )(xu, *prepared_params)
    else:
        # Large batch: tile the batch dim; weights/biases stay whole-array
        # VMEM resident (fetched once, single-buffered) across all grid steps.
        q = pl.pallas_call(
            critic_kernel,
            out_shape=out_shape,
            grid=grid,
            in_specs=[pl.BlockSpec((_TILE_M, k), lambda i: (i, 0))]
                     + [vmem] * n_w,
            out_specs=pl.BlockSpec((_TILE_M, q_lanes), lambda i: (i, 0)),
            compiler_params=pltpu.CompilerParams(
                dimension_semantics=_batch_axis_semantics(), **cparams),
        )(xu, *prepared_params)

    return q[:batch, :1]


def init_critic_params(key, state_dim, action_dim):
    """PyTorch-Linear-style init: U(-1/sqrt(fan_in), 1/sqrt(fan_in)); f32."""
    dims = [state_dim + action_dim, 400, 300, 200, 200, 100, 1]
    params = []
    for i in range(len(dims) - 1):
        fan_in, fan_out = dims[i], dims[i + 1]
        key, kw, kb = jax.random.split(key, 3)
        bound = 1.0 / jnp.sqrt(jnp.float32(fan_in))
        w = jax.random.uniform(kw, (fan_in, fan_out), jnp.float32, -bound, bound)
        b = jax.random.uniform(kb, (1, fan_out), jnp.float32, -bound, bound)
        params.append((w, b))
    return params


if __name__ == "__main__":
    key = jax.random.PRNGKey(0)

    batch = 2
    state_dim = 8      # FormulaEnv state_dim (synthetic small value)
    action_dim = 2     # acceleration, steering_velocity

    key, kx, ku, kp = jax.random.split(key, 4)
    x = jax.random.normal(kx, (batch, state_dim), jnp.float32)
    u = jax.random.normal(ku, (batch, action_dim), jnp.float32)
    params = init_critic_params(kp, state_dim, action_dim)
    prepared = prepare_critic_params(params)       # pad/cast once

    q = critic_forward(x, u, prepared)
    q = jax.block_until_ready(q)

    # Plain-JAX reference mirroring the kernel's bf16-weight / bf16-activation
    # arithmetic (zero-padding does not change the math).
    # Weights are bf16-quantized, so exact f32 PyTorch parity is not expected.
    h = jnp.concatenate([x, u], axis=-1).astype(jnp.bfloat16)
    ref = None
    for i, (w, b) in enumerate(params):
        acc = jnp.dot(h, w.astype(jnp.bfloat16),
                      preferred_element_type=jnp.float32) + b
        if i < len(params) - 1:
            h = jax.nn.relu(acc).astype(jnp.bfloat16)
        else:
            ref = acc

    assert q.shape == (batch, 1)
    assert jnp.allclose(q, ref, atol=1e-2, rtol=1e-2), (q, ref)

    print("KERNEL_OK")
</pallas_src>

<mosaic_0001>
module attributes {stable_mosaic.version = 11 : i64} {
  func.func @critic_kernel(%arg0: memref<8x10xf32, #tpu.memory_space<vmem>>, %arg1: memref<10x512xbf16, #tpu.memory_space<vmem>>, %arg2: memref<1x512xf32, #tpu.memory_space<vmem>>, %arg3: memref<512x384xbf16, #tpu.memory_space<vmem>>, %arg4: memref<1x384xf32, #tpu.memory_space<vmem>>, %arg5: memref<384x256xbf16, #tpu.memory_space<vmem>>, %arg6: memref<1x256xf32, #tpu.memory_space<vmem>>, %arg7: memref<256x256xbf16, #tpu.memory_space<vmem>>, %arg8: memref<1x256xf32, #tpu.memory_space<vmem>>, %arg9: memref<256x128xbf16, #tpu.memory_space<vmem>>, %arg10: memref<1x128xf32, #tpu.memory_space<vmem>>, %arg11: memref<128x128xbf16, #tpu.memory_space<vmem>>, %arg12: memref<1x128xf32, #tpu.memory_space<vmem>>, %arg13: memref<8x128xf32, #tpu.memory_space<vmem>>) attributes {dimension_semantics = [], scalar_prefetch = 0 : i64, scratch_operands = 0 : i64, tpu.core_type = #tpu.core_type<tc>} {
    %c0 = arith.constant 0 : index
    %c0_0 = arith.constant 0 : index
    %0 = vector.load %arg0[%c0, %c0_0] : memref<8x10xf32, #tpu.memory_space<vmem>>, vector<8x10xf32>
    %1 = arith.truncf %0 : vector<8x10xf32> to vector<8x10xbf16>
    %c0_1 = arith.constant 0 : index
    %c0_2 = arith.constant 0 : index
    %2 = vector.load %arg1[%c0_1, %c0_2] : memref<10x512xbf16, #tpu.memory_space<vmem>>, vector<10x512xbf16>
    %cst = arith.constant dense<0.000000e+00> : vector<8x512xf32>
    %3 = tpu.matmul %1, %2, %cst {dimension_numbers = #tpu.dot_dimension_numbers<[1], [0], [0], [1], [0, 0, 1, 1], [], []>} : vector<8x10xbf16>, vector<10x512xbf16>, vector<8x512xf32> -> vector<8x512xf32>
    %c0_3 = arith.constant 0 : index
    %c0_4 = arith.constant 0 : index
    %4 = vector.load %arg2[%c0_3, %c0_4] : memref<1x512xf32, #tpu.memory_space<vmem>>, vector<1x512xf32>
    %5 = vector.broadcast %4 : vector<1x512xf32> to vector<8x512xf32>
    %6 = arith.addf %3, %5 : vector<8x512xf32>
    %cst_5 = arith.constant 0.000000e+00 : f32
    %7 = vector.broadcast %cst_5 : f32 to vector<8x512xf32>
    %8 = arith.maximumf %6, %7 : vector<8x512xf32>
    %9 = arith.truncf %8 : vector<8x512xf32> to vector<8x512xbf16>
    %c0_6 = arith.constant 0 : index
    %c0_7 = arith.constant 0 : index
    %10 = vector.load %arg3[%c0_6, %c0_7] : memref<512x384xbf16, #tpu.memory_space<vmem>>, vector<512x384xbf16>
    %cst_8 = arith.constant dense<0.000000e+00> : vector<8x384xf32>
    %11 = tpu.matmul %9, %10, %cst_8 {dimension_numbers = #tpu.dot_dimension_numbers<[1], [0], [0], [1], [0, 0, 1, 1], [], []>} : vector<8x512xbf16>, vector<512x384xbf16>, vector<8x384xf32> -> vector<8x384xf32>
    %c0_9 = arith.constant 0 : index
    %c0_10 = arith.constant 0 : index
    %12 = vector.load %arg4[%c0_9, %c0_10] : memref<1x384xf32, #tpu.memory_space<vmem>>, vector<1x384xf32>
    %13 = vector.broadcast %12 : vector<1x384xf32> to vector<8x384xf32>
    %14 = arith.addf %11, %13 : vector<8x384xf32>
    %cst_11 = arith.constant 0.000000e+00 : f32
    %15 = vector.broadcast %cst_11 : f32 to vector<8x384xf32>
    %16 = arith.maximumf %14, %15 : vector<8x384xf32>
    %17 = arith.truncf %16 : vector<8x384xf32> to vector<8x384xbf16>
    %c0_12 = arith.constant 0 : index
    %c0_13 = arith.constant 0 : index
    %18 = vector.load %arg5[%c0_12, %c0_13] : memref<384x256xbf16, #tpu.memory_space<vmem>>, vector<384x256xbf16>
    %cst_14 = arith.constant dense<0.000000e+00> : vector<8x256xf32>
    %19 = tpu.matmul %17, %18, %cst_14 {dimension_numbers = #tpu.dot_dimension_numbers<[1], [0], [0], [1], [0, 0, 1, 1], [], []>} : vector<8x384xbf16>, vector<384x256xbf16>, vector<8x256xf32> -> vector<8x256xf32>
    %c0_15 = arith.constant 0 : index
    %c0_16 = arith.constant 0 : index
    %20 = vector.load %arg6[%c0_15, %c0_16] : memref<1x256xf32, #tpu.memory_space<vmem>>, vector<1x256xf32>
    %21 = vector.broadcast %20 : vector<1x256xf32> to vector<8x256xf32>
    %22 = arith.addf %19, %21 : vector<8x256xf32>
    %cst_17 = arith.constant 0.000000e+00 : f32
    %23 = vector.broadcast %cst_17 : f32 to vector<8x256xf32>
    %24 = arith.maximumf %22, %23 : vector<8x256xf32>
    %25 = arith.truncf %24 : vector<8x256xf32> to vector<8x256xbf16>
    %c0_18 = arith.constant 0 : index
    %c0_19 = arith.constant 0 : index
    %26 = vector.load %arg7[%c0_18, %c0_19] : memref<256x256xbf16, #tpu.memory_space<vmem>>, vector<256x256xbf16>
    %cst_20 = arith.constant dense<0.000000e+00> : vector<8x256xf32>
    %27 = tpu.matmul %25, %26, %cst_20 {dimension_numbers = #tpu.dot_dimension_numbers<[1], [0], [0], [1], [0, 0, 1, 1], [], []>} : vector<8x256xbf16>, vector<256x256xbf16>, vector<8x256xf32> -> vector<8x256xf32>
    %c0_21 = arith.constant 0 : index
    %c0_22 = arith.constant 0 : index
    %28 = vector.load %arg8[%c0_21, %c0_22] : memref<1x256xf32, #tpu.memory_space<vmem>>, vector<1x256xf32>
    %29 = vector.broadcast %28 : vector<1x256xf32> to vector<8x256xf32>
    %30 = arith.addf %27, %29 : vector<8x256xf32>
    %cst_23 = arith.constant 0.000000e+00 : f32
    %31 = vector.broadcast %cst_23 : f32 to vector<8x256xf32>
    %32 = arith.maximumf %30, %31 : vector<8x256xf32>
    %33 = arith.truncf %32 : vector<8x256xf32> to vector<8x256xbf16>
    %c0_24 = arith.constant 0 : index
    %c0_25 = arith.constant 0 : index
    %34 = vector.load %arg9[%c0_24, %c0_25] : memref<256x128xbf16, #tpu.memory_space<vmem>>, vector<256x128xbf16>
    %cst_26 = arith.constant dense<0.000000e+00> : vector<8x128xf32>
    %35 = tpu.matmul %33, %34, %cst_26 {dimension_numbers = #tpu.dot_dimension_numbers<[1], [0], [0], [1], [0, 0, 1, 1], [], []>} : vector<8x256xbf16>, vector<256x128xbf16>, vector<8x128xf32> -> vector<8x128xf32>
    %c0_27 = arith.constant 0 : index
    %c0_28 = arith.constant 0 : index
    %36 = vector.load %arg10[%c0_27, %c0_28] : memref<1x128xf32, #tpu.memory_space<vmem>>, vector<1x128xf32>
    %37 = vector.broadcast %36 : vector<1x128xf32> to vector<8x128xf32>
    %38 = arith.addf %35, %37 : vector<8x128xf32>
    %cst_29 = arith.constant 0.000000e+00 : f32
    %39 = vector.broadcast %cst_29 : f32 to vector<8x128xf32>
    %40 = arith.maximumf %38, %39 : vector<8x128xf32>
    %41 = arith.truncf %40 : vector<8x128xf32> to vector<8x128xbf16>
    %c0_30 = arith.constant 0 : index
    %c0_31 = arith.constant 0 : index
    %42 = vector.load %arg11[%c0_30, %c0_31] : memref<128x128xbf16, #tpu.memory_space<vmem>>, vector<128x128xbf16>
    %cst_32 = arith.constant dense<0.000000e+00> : vector<8x128xf32>
    %43 = tpu.matmul %41, %42, %cst_32 {dimension_numbers = #tpu.dot_dimension_numbers<[1], [0], [0], [1], [0, 0, 1, 1], [], []>} : vector<8x128xbf16>, vector<128x128xbf16>, vector<8x128xf32> -> vector<8x128xf32>
    %c0_33 = arith.constant 0 : index
    %c0_34 = arith.constant 0 : index
    %44 = vector.load %arg12[%c0_33, %c0_34] : memref<1x128xf32, #tpu.memory_space<vmem>>, vector<1x128xf32>
    %45 = vector.broadcast %44 : vector<1x128xf32> to vector<8x128xf32>
    %46 = arith.addf %43, %45 : vector<8x128xf32>
    %c0_35 = arith.constant 0 : index
    %c0_36 = arith.constant 0 : index
    %47 = vector.load %arg13[%c0_35, %c0_36] : memref<8x128xf32, #tpu.memory_space<vmem>>, vector<8x128xf32>
    tpu.vector_store %arg13[%c0_35, %c0_36], %46 {strides = array<i32>} : memref<8x128xf32, #tpu.memory_space<vmem>>, vector<8x128xf32>,
    return
  }
}

</mosaic_0001>

<llo_original>
// kernel: tpu_custom_call.1
$region0: #{tpu_custom_call.1}
  #allocation0 [shape = 'u32[]', space=smem, size = 0x4, offset = 0x4, fixed_abs, tag = 'smem constant byte address 0x4 - core index']
  #allocation1 [shape = 'u32[144,128]{1,0:T(1,128)}', space=vmem, size = 0x12000, scoped, tag = 'internal scratch']
  %s0 = inlined_call_operand.hbm [shape: f32[8,10], index: 0, kind: input, shape index: {}]
  %s1 = inlined_call_operand.hbm [shape: bf16[10,512], index: 1, kind: input, shape index: {}]
  %s2 = inlined_call_operand.vmem [shape: f32[1,512], index: 2, kind: input, shape index: {}]
  %s3 = inlined_call_operand.hbm [shape: bf16[512,384], index: 3, kind: input, shape index: {}]
  %s4 = inlined_call_operand.vmem [shape: f32[1,384], index: 4, kind: input, shape index: {}]
  %s5 = inlined_call_operand.hbm [shape: bf16[384,256], index: 5, kind: input, shape index: {}]
  %s6 = inlined_call_operand.vmem [shape: f32[1,256], index: 6, kind: input, shape index: {}]
  %s7 = inlined_call_operand.hbm [shape: bf16[256,256], index: 7, kind: input, shape index: {}]
  %s8 = inlined_call_operand.vmem [shape: f32[1,256], index: 8, kind: input, shape index: {}]
  %s9 = inlined_call_operand.hbm [shape: bf16[256,128], index: 9, kind: input, shape index: {}]
  %s10 = inlined_call_operand.vmem [shape: f32[1,128], index: 10, kind: input, shape index: {}]
  %s11 = inlined_call_operand.hbm [shape: bf16[128,128], index: 11, kind: input, shape index: {}]
  %s12 = inlined_call_operand.vmem [shape: f32[1,128], index: 12, kind: input, shape index: {}]
  %s13 = inlined_call_operand.hbm [shape: f32[8,128], index: 13, kind: output, shape index: {}]
  %s14 = sld [smem:[#allocation0]]
  $region90: #{tpu_custom_call.1} parent=0
    _
  %s16 = ssub.s32 1, %s14
  %s17 = scalar_select 0, %s16, %s14
  $region1: #{tpu_custom_call.1} parent=0
    #allocation2 [shape = 'u8[4096]{0}', space=vmem, size = 0x1000, scoped, tag = 'input window, operand 0, single buffered']
    #allocation3 [shape = 's32[1]{0}', space=sflag, size = 0x4, scoped, tag = 'scoped memory for tpu_custom_call.1']
    #allocation4 [shape = 's32[1]{0}', space=sflag, size = 0x4, scoped, tag = 'scoped memory for tpu_custom_call.1']
    #allocation5 [shape = 'u8[16384]{0}', space=vmem, size = 0x4000, scoped, tag = 'input window, operand 1, single buffered']
    #allocation6 [shape = 's32[1]{0}', space=sflag, size = 0x4, scoped, tag = 'scoped memory for tpu_custom_call.1']
    #allocation7 [shape = 'u8[393216]{0}', space=vmem, size = 0x60000, scoped, tag = 'input window, operand 3, single buffered']
    #allocation8 [shape = 'u8[196608]{0}', space=vmem, size = 0x30000, scoped, tag = 'input window, operand 5, single buffered']
    #allocation9 [shape = 's32[1]{0}', space=sflag, size = 0x4, scoped, tag = 'scoped memory for tpu_custom_call.1']
    #allocation10 [shape = 'u8[131072]{0}', space=vmem, size = 0x20000, scoped, tag = 'input window, operand 7, single buffered']
    #allocation11 [shape = 'u8[65536]{0}', space=vmem, size = 0x10000, scoped, tag = 'input window, operand 9, single buffered']
    #allocation12 [shape = 's32[1]{0}', space=sflag, size = 0x4, scoped, tag = 'scoped memory for tpu_custom_call.1']
    #allocation13 [shape = 'u8[32768]{0}', space=vmem, size = 0x8000, scoped, tag = 'input window, operand 11, single buffered']
    #allocation14 [shape = 'u8[4096]{0}', space=vmem, size = 0x1000, scoped, tag = 'output window, operand 0, single buffered']
    %18 = vsyncpa [#allocation3], 0
    %19 = vsyncpa [#allocation6], 0
    %20 = vsyncpa [#allocation9], 0
    %21 = vsyncpa [#allocation12], 0
    %22 = vsyncpa [#allocation4], 0
    // Predicated region
    $region2: #{tpu_custom_call.1} parent=1 // pred_check
      _
    $region3: #{tpu_custom_call.1} parent=1 // pred_check_branch
      %24 = sbr.rel (0) target = $region5
    $region4: #{tpu_custom_call.1} parent=1 // pred_region
      %s26 = ssub.s32 128, 128
      %27 = vsyncadd [#allocation3], %s26
      %s29 = sshll.u32 [#allocation2], 4
      %s30 = int_to_ptr.vmem [resolvable:$true] %s29
      %32 = dma.hbm_to_vmem [thread:$0]  %s0, 128, %s30, [#allocation3]
    $region5: #{tpu_custom_call.1} parent=1 // pred_fallthru
      _
    // Predicated region
    $region6: #{tpu_custom_call.1} parent=1 // pred_check
      _
    $region7: #{tpu_custom_call.1} parent=1 // pred_check_branch
      %34 = sbr.rel (0) target = $region9
    $region8: #{tpu_custom_call.1} parent=1 // pred_region
      %s36 = ssub.s32 512, 512
      %37 = vsyncadd [#allocation6], %s36
      %s38 = sshll.u32 [#allocation5], 4
      %s39 = int_to_ptr.vmem [resolvable:$true] %s38
      %44 = dma.hbm_to_vmem [thread:$0]  %s1, 512, %s39, [#allocation6], 256, 256, 16
    $region9: #{tpu_custom_call.1} parent=1 // pred_fallthru
      _
    // Predicated region
    $region10: #{tpu_custom_call.1} parent=1 // pred_check
      _
    $region11: #{tpu_custom_call.1} parent=1 // pred_check_branch
      %46 = sbr.rel (0) target = $region13
    $region12: #{tpu_custom_call.1} parent=1 // pred_region
      _
    $region13: #{tpu_custom_call.1} parent=1 // pred_fallthru
      _
    // Predicated region
    $region14: #{tpu_custom_call.1} parent=1 // pred_check
      _
    $region15: #{tpu_custom_call.1} parent=1 // pred_check_branch
      %48 = sbr.rel (0) target = $region17
    $region16: #{tpu_custom_call.1} parent=1 // pred_region
      %s50 = ssub.s32 12288, 12288
      %51 = vsyncadd [#allocation6], %s50
      %s52 = sshll.u32 [#allocation7], 4
      %s53 = int_to_ptr.vmem [resolvable:$true] %s52
      %58 = dma.hbm_to_vmem [thread:$0]  %s3, 12288, %s53, [#allocation6], 192, 192, 12
    $region17: #{tpu_custom_call.1} parent=1 // pred_fallthru
      _
    // Predicated region
    $region18: #{tpu_custom_call.1} parent=1 // pred_check
      _
    $region19: #{tpu_custom_call.1} parent=1 // pred_check_branch
      %60 = sbr.rel (0) target = $region21
    $region20: #{tpu_custom_call.1} parent=1 // pred_region
      _
    $region21: #{tpu_custom_call.1} parent=1 // pred_fallthru
      _
    // Predicated region
    $region22: #{tpu_custom_call.1} parent=1 // pred_check
      _
    $region23: #{tpu_custom_call.1} parent=1 // pred_check_branch
      %62 = sbr.rel (0) target = $region25
    $region24: #{tpu_custom_call.1} parent=1 // pred_region
      %s64 = ssub.s32 6144, 6144
      %65 = vsyncadd [#allocation9], %s64
      %s66 = sshll.u32 [#allocation8], 4
      %s67 = int_to_ptr.vmem [resolvable:$true] %s66
      %72 = dma.hbm_to_vmem [thread:$0]  %s5, 6144, %s67, [#allocation9], 128, 128, 8
    $region25: #{tpu_custom_call.1} parent=1 // pred_fallthru
      _
    // Predicated region
    $region26: #{tpu_custom_call.1} parent=1 // pred_check
      _
    $region27: #{tpu_custom_call.1} parent=1 // pred_check_branch
      %74 = sbr.rel (0) target = $region29
    $region28: #{tpu_custom_call.1} parent=1 // pred_region
      _
    $region29: #{tpu_custom_call.1} parent=1 // pred_fallthru
      _
    // Predicated region
    $region30: #{tpu_custom_call.1} parent=1 // pred_check
      _
    $region31: #{tpu_custom_call.1} parent=1 // pred_check_branch
      %76 = sbr.rel (0) target = $region33
    $region32: #{tpu_custom_call.1} parent=1 // pred_region
      %s78 = ssub.s32 4096, 4096
      %79 = vsyncadd [#allocation9], %s78
      %s80 = sshll.u32 [#allocation10], 4
      %s81 = int_to_ptr.vmem [resolvable:$true] %s80
      %86 = dma.hbm_to_vmem [thread:$0]  %s7, 4096, %s81, [#allocation9], 128, 128, 8
    $region33: #{tpu_custom_call.1} parent=1 // pred_fallthru
      _
    // Predicated region
    $region34: #{tpu_custom_call.1} parent=1 // pred_check
      _
    $region35: #{tpu_custom_call.1} parent=1 // pred_check_branch
      %88 = sbr.rel (0) target = $region37
    $region36: #{tpu_custom_call.1} parent=1 // pred_region
      _
    $region37: #{tpu_custom_call.1} parent=1 // pred_fallthru
      _
    // Predicated region
    $region38: #{tpu_custom_call.1} parent=1 // pred_check
      _
    $region39: #{tpu_custom_call.1} parent=1 // pred_check_branch
      %90 = sbr.rel (0) target = $region41
    $region40: #{tpu_custom_call.1} parent=1 // pred_region
      %s92 = ssub.s32 2048, 2048
      %93 = vsyncadd [#allocation12], %s92
      %s94 = sshll.u32 [#allocation11], 4
      %s95 = int_to_ptr.vmem [resolvable:$true] %s94
      %100 = dma.hbm_to_vmem [thread:$0]  %s9, 2048, %s95, [#allocation12], 64, 64, 4
    $region41: #{tpu_custom_call.1} parent=1 // pred_fallthru
      _
    // Predicated region
    $region42: #{tpu_custom_call.1} parent=1 // pred_check
      _
    $region43: #{tpu_custom_call.1} parent=1 // pred_check_branch
      %102 = sbr.rel (0) target = $region45
    $region44: #{tpu_custom_call.1} parent=1 // pred_region
      _
    $region45: #{tpu_custom_call.1} parent=1 // pred_fallthru
      _
    // Predicated region
    $region46: #{tpu_custom_call.1} parent=1 // pred_check
      _
    $region47: #{tpu_custom_call.1} parent=1 // pred_check_branch
      %104 = sbr.rel (0) target = $region49
    $region48: #{tpu_custom_call.1} parent=1 // pred_region
      %s106 = ssub.s32 1024, 1024
      %107 = vsyncadd [#allocation12], %s106
      %s108 = sshll.u32 [#allocation13], 4
      %s109 = int_to_ptr.vmem [resolvable:$true] %s108
      %114 = dma.hbm_to_vmem [thread:$0]  %s11, 1024, %s109, [#allocation12], 64, 64, 4
    $region49: #{tpu_custom_call.1} parent=1 // pred_fallthru
      _
    // Predicated region
    $region50: #{tpu_custom_call.1} parent=1 // pred_check
      _
    $region51: #{tpu_custom_call.1} parent=1 // pred_check_branch
      %116 = sbr.rel (0) target = $region53
    $region52: #{tpu_custom_call.1} parent=1 // pred_region
      _
    $region53: #{tpu_custom_call.1} parent=1 // pred_fallthru
      _
    // Predicated region
    $region54: #{tpu_custom_call.1} parent=1 // pred_check
      _
    $region55: #{tpu_custom_call.1} parent=1 // pred_check_branch
      %118 = sbr.rel (0) target = $region57
    $region56: #{tpu_custom_call.1} parent=1 // pred_region
      %119 = dma.done [#allocation3], 128
    $region57: #{tpu_custom_call.1} parent=1 // pred_fallthru
      _
    // Predicated region
    $region58: #{tpu_custom_call.1} parent=1 // pred_check
      _
    $region59: #{tpu_custom_call.1} parent=1 // pred_check_branch
      %121 = sbr.rel (0) target = $region61
    $region60: #{tpu_custom_call.1} parent=1 // pred_region
      %122 = dma.done [#allocation6], 512
    $region61: #{tpu_custom_call.1} parent=1 // pred_fallthru
      _
    // Predicated region
    $region62: #{tpu_custom_call.1} parent=1 // pred_check
      _
    $region63: #{tpu_custom_call.1} parent=1 // pred_check_branch
      %124 = sbr.rel (0) target = $region65
    $region64: #{tpu_custom_call.1} parent=1 // pred_region
      %125 = dma.done [#allocation6], 12288
    $region65: #{tpu_custom_call.1} parent=1 // pred_fallthru
      _
    // Predicated region
    $region66: #{tpu_custom_call.1} parent=1 // pred_check
      _
    $region67: #{tpu_custom_call.1} parent=1 // pred_check_branch
      %127 = sbr.rel (0) target = $region69
    $region68: #{tpu_custom_call.1} parent=1 // pred_region
      %128 = dma.done [#allocation9], 6144
    $region69: #{tpu_custom_call.1} parent=1 // pred_fallthru
      _
    // Predicated region
    $region70: #{tpu_custom_call.1} parent=1 // pred_check
      _
    $region71: #{tpu_custom_call.1} parent=1 // pred_check_branch
      %130 = sbr.rel (0) target = $region73
    $region72: #{tpu_custom_call.1} parent=1 // pred_region
      %131 = dma.done [#allocation9], 4096
    $region73: #{tpu_custom_call.1} parent=1 // pred_fallthru
      _
    // Predicated region
    $region74: #{tpu_custom_call.1} parent=1 // pred_check
      _
    $region75: #{tpu_custom_call.1} parent=1 // pred_check_branch
      %133 = sbr.rel (0) target = $region77
    $region76: #{tpu_custom_call.1} parent=1 // pred_region
      %134 = dma.done [#allocation12], 2048
    $region77: #{tpu_custom_call.1} parent=1 // pred_fallthru
      _
    // Predicated region
    $region78: #{tpu_custom_call.1} parent=1 // pred_check
      _
    $region79: #{tpu_custom_call.1} parent=1 // pred_check_branch
      %136 = sbr.rel (0) target = $region81
    $region80: #{tpu_custom_call.1} parent=1 // pred_region
      %137 = dma.done [#allocation12], 1024
    $region81: #{tpu_custom_call.1} parent=1 // pred_fallthru
      _
    %v139 = vld [vmem:[#allocation2] sm:$0xff]
    %v140 = vpack.c.bf16 %v139, %v139
    %v141 = vld [vmem:[#allocation5] sm:$0xff]
    %v142 = vld [vmem:[#allocation5 + $0x8] sm:$0xff]
    %v143 = vld [vmem:[#allocation5 + $0x10] sm:$0x11]
    %v144 = vld [vmem:[#allocation5 + $0x18] sm:$0x11]
    %v145 = vld [vmem:[%s2] sm:$0xf]
    %v147 = vlaneseq
    %v148 = vshrl.u32 %v147, 7
    %v149 = vsub.s32 0, %v148
    %v150 = vrot.slane %v145, %v149
    %v151 = vlaneseq
    %v152 = vshrl.u32 %v151, 7
    %v153 = vsub.s32 1, %v152
    %v154 = vrot.slane %v145, %v153
    %v155 = vlaneseq
    %v156 = vshrl.u32 %v155, 7
    %v157 = vsub.s32 2, %v156
    %v158 = vrot.slane %v145, %v157
    %v159 = vlaneseq
    %v160 = vshrl.u32 %v159, 7
    %v161 = vsub.s32 3, %v160
    %v162 = vrot.slane %v145, %v161
    %v171 = vunpack.c.l.b16 %v141
    %v172 = vunpack.c.h.b16 %v141
    %v173 = vunpack.c.l.b16 %v142
    %v174 = vunpack.c.h.b16 %v142
    %v175 = vunpack.c.l.b16 %v143
    %v176 = vunpack.c.h.b16 %v143
    %v177 = vunpack.c.l.b16 %v144
    %v178 = vunpack.c.h.b16 %v144
    %v179 = vpack.c.b16 %v175, %v171
    %v180 = vpack.c.b16 %v176, %v172
    %v181 = vpack.c.b16 %v177, %v173
    %v182 = vpack.c.b16 %v178, %v174
    %vm183 = vcmask 80896
    %v185 = vsel %vm183, %v140, 0
    %vm187 = vcmask 1044480
    %v189 = vsel %vm187, %v179, 0
    %v192 = vsel %vm187, %v180, 0
    %v195 = vsel %vm187, %v181, 0
    %v198 = vsel %vm187, %v182, 0
    %200 = vmatprep.subr.bf16.mxu0 %v192
    %201 = vmatpush1.bf16.msra.mxu0 %v189
    %202 = vmatprep.subr.bf16.mxu0 0
    %203 = vmatpush1.bf16.msra.mxu0 0
    %204 = vmatprep.subr.bf16.mxu0 0
    %205 = vmatpush1.bf16.msra.mxu0 0
    %206 = vmatprep.subr.bf16.mxu0 0
    %207 = vmatpush1.bf16.msra.mxu0 0
    %208 = vmatprep.subr.bf16.mxu0 0
    %209 = vmatpush1.bf16.msra.mxu0 0
    %210 = vmatprep.subr.bf16.mxu0 0
    %211 = vmatpush1.bf16.msra.mxu0 0
    %212 = vmatprep.subr.bf16.mxu0 0
    %213 = vmatpush1.bf16.msra.mxu0 0
    %214 = vmatprep.subr.bf16.mxu0 0
    %215 = vmatpush1.bf16.msra.mxu0 0
    %216 = vmatprep.subr.bf16.mxu0 0
    %217 = vmatpush1.bf16.msra.mxu0 0
    %218 = vmatprep.subr.bf16.mxu0 0
    %219 = vmatpush1.bf16.msra.mxu0 0
    %220 = vmatprep.subr.bf16.mxu0 0
    %221 = vmatpush1.bf16.msra.mxu0 0
    %222 = vmatprep.subr.bf16.mxu0 0
    %223 = vmatpush1.bf16.msra.mxu0 0
    %224 = vmatprep.subr.bf16.mxu0 0
    %225 = vmatpush1.bf16.msra.mxu0 0
    %226 = vmatprep.subr.bf16.mxu0 0
    %227 = vmatpush1.bf16.msra.mxu0 0
    %228 = vmatprep.subr.bf16.mxu0 0
    %229 = vmatpush1.bf16.msra.mxu0 0
    %230 = vmatprep.subr.bf16.mxu0 0
    %231 = vmatpush1.bf16.msra.mxu0 0
    %232 = vmatprep.mubr.bf16.mxu0 0
    %233 = vmatmul.mubr.bf16.gmra.mrb[0].mxu0 %v185
    %v234 = vpop.f32.mrb[0].mxu0
    %v235 = vadd.f32 %v150, %v234
    %v236 = vpop.f32.mrb[0].mxu0
    %v237 = vadd.f32 %v154, %v236
    %v238 = vpop.f32.mrb[0].mxu0
    %v239 = vpop.f32.mrb[0].mxu0
    %240 = vdwg.mxu0
    %241 = vmatprep.subr.bf16.mxu0 %v198
    %242 = vmatpush1.bf16.msra.mxu0 %v195
    %243 = vmatprep.subr.bf16.mxu0 0
    %244 = vmatpush1.bf16.msra.mxu0 0
    %245 = vmatprep.subr.bf16.mxu0 0
    %246 = vmatpush1.bf16.msra.mxu0 0
    %247 = vmatprep.subr.bf16.mxu0 0
    %248 = vmatpush1.bf16.msra.mxu0 0
    %249 = vmatprep.subr.bf16.mxu0 0
    %250 = vmatpush1.bf16.msra.mxu0 0
    %251 = vmatprep.subr.bf16.mxu0 0
    %252 = vmatpush1.bf16.msra.mxu0 0
    %253 = vmatprep.subr.bf16.mxu0 0
    %254 = vmatpush1.bf16.msra.mxu0 0
    %255 = vmatprep.subr.bf16.mxu0 0
    %256 = vmatpush1.bf16.msra.mxu0 0
    %257 = vmatprep.subr.bf16.mxu0 0
    %258 = vmatpush1.bf16.msra.mxu0 0
    %259 = vmatprep.subr.bf16.mxu0 0
    %260 = vmatpush1.bf16.msra.mxu0 0
    %261 = vmatprep.subr.bf16.mxu0 0
    %262 = vmatpush1.bf16.msra.mxu0 0
    %263 = vmatprep.subr.bf16.mxu0 0
    %264 = vmatpush1.bf16.msra.mxu0 0
    %265 = vmatprep.subr.bf16.mxu0 0
    %266 = vmatpush1.bf16.msra.mxu0 0
    %267 = vmatprep.subr.bf16.mxu0 0
    %268 = vmatpush1.bf16.msra.mxu0 0
    %269 = vmatprep.subr.bf16.mxu0 0
    %270 = vmatpush1.bf16.msra.mxu0 0
    %271 = vmatprep.subr.bf16.mxu0 0
    %272 = vmatpush1.bf16.msra.mxu0 0
    %273 = vmatprep.mubr.bf16.mxu0 0
    %274 = vmatmul.mubr.bf16.gmra.mrb[0].mxu0 %v185
    %v275 = vpop.f32.mrb[0].mxu0
    %v276 = vadd.f32 %v158, %v275
    %v277 = vpop.f32.mrb[0].mxu0
    %v278 = vadd.f32 %v162, %v277
    %v279 = vpop.f32.mrb[0].mxu0
    %v280 = vpop.f32.mrb[0].mxu0
    %281 = vdwg.mxu0
    %v282 = vmax.f32 %v235, 0.0
    %v283 = vmax.f32 %v237, 0.0
    %v284 = vmax.f32 %v276, 0.0
    %v285 = vmax.f32 %v278, 0.0
    %v286 = vpack.c.bf16 %v282, %v282
    %v287 = vpack.c.bf16 %v283, %v283
    %v288 = vpack.c.bf16 %v284, %v284
    %v289 = vpack.c.bf16 %v285, %v285
    %v290 = vld [vmem:[#allocation7] sm:$0xff]
    %v291 = vld [vmem:[#allocation7 + $0x8] sm:$0xf]
    %v292 = vld [vmem:[#allocation7 + $0xc] sm:$0xff]
    %v293 = vld [vmem:[#allocation7 + $0x14] sm:$0xf]
    %v294 = vld [vmem:[#allocation7 + $0x18] sm:$0xff]
    %v295 = vld [vmem:[#allocation7 + $0x20] sm:$0xf]
    %v296 = vld [vmem:[#allocation7 + $0x24] sm:$0xff]
    %v297 = vld [vmem:[#allocation7 + $0x2c] sm:$0xf]
    %v298 = vld [vmem:[#allocation7 + $0x30] sm:$0xff]
    %v299 = vld [vmem:[#allocation7 + $0x38] sm:$0xf]
    %v300 = vld [vmem:[#allocation7 + $0x3c] sm:$0xff]
    %v301 = vld [vmem:[#allocation7 + $0x44] sm:$0xf]
    %v302 = vld [vmem:[#allocation7 + $0x48] sm:$0xff]
    %v303 = vld [vmem:[#allocation7 + $0x50] sm:$0xf]
    %v304 = vld [vmem:[#allocation7 + $0x54] sm:$0xff]
    %v305 = vld [vmem:[#allocation7 + $0x5c] sm:$0xf]
    %v306 = vld [vmem:[#allocation7 + $0x60] sm:$0xff]
    %v307 = vld [vmem:[#allocation7 + $0x68] sm:$0xf]
    %v308 = vld [vmem:[#allocation7 + $0x6c] sm:$0xff]
    %v309 = vld [vmem:[#allocation7 + $0x74] sm:$0xf]
    %v310 = vld [vmem:[#allocation7 + $0x78] sm:$0xff]
    %v311 = vld [vmem:[#allocation7 + $0x80] sm:$0xf]
    %v312 = vld [vmem:[#allocation7 + $0x84] sm:$0xff]
    %v313 = vld [vmem:[#allocation7 + $0x8c] sm:$0xf]
    %v314 = vld [vmem:[#allocation7 + $0x90] sm:$0xff]
    %v315 = vld [vmem:[#allocation7 + $0x98] sm:$0xf]
    %v316 = vld [vmem:[#allocation7 + $0x9c] sm:$0xff]
    %v317 = vld [vmem:[#allocation7 + $0xa4] sm:$0xf]
    %v318 = vld [vmem:[#allocation7 + $0xa8] sm:$0xff]
    %v319 = vld [vmem:[#allocation7 + $0xb0] sm:$0xf]
    %v320 = vld [vmem:[#allocation7 + $0xb4] sm:$0xff]
    %v321 = vld [vmem:[#allocation7 + $0xbc] sm:$0xf]
    %v322 = vld [vmem:[#allocation7 + $0xc0] sm:$0xff]
    %v323 = vld [vmem:[#allocation7 + $0xc8] sm:$0xf]
    %v324 = vld [vmem:[#allocation7 + $0xcc] sm:$0xff]
    %v325 = vld [vmem:[#allocation7 + $0xd4] sm:$0xf]
    %v326 = vld [vmem:[#allocation7 + $0xd8] sm:$0xff]
    %v327 = vld [vmem:[#allocation7 + $0xe0] sm:$0xf]
    %v328 = vld [vmem:[#allocation7 + $0xe4] sm:$0xff]
    %v329 = vld [vmem:[#allocation7 + $0xec] sm:$0xf]
    %v330 = vld [vmem:[#allocation7 + $0xf0] sm:$0xff]
    %v331 = vld [vmem:[#allocation7 + $0xf8] sm:$0xf]
    %v332 = vld [vmem:[#allocation7 + $0xfc] sm:$0xff]
    %v333 = vld [vmem:[#allocation7 + $0x104] sm:$0xf]
    %v334 = vld [vmem:[#allocation7 + $0x108] sm:$0xff]
    %v335 = vld [vmem:[#allocation7 + $0x110] sm:$0xf]
    %v336 = vld [vmem:[#allocation7 + $0x114] sm:$0xff]
    %v337 = vld [vmem:[#allocation7 + $0x11c] sm:$0xf]
    %v338 = vld [vmem:[#allocation7 + $0x120] sm:$0xff]
    %v339 = vld [vmem:[#allocation7 + $0x128] sm:$0xf]
    %v340 = vld [vmem:[#allocation7 + $0x12c] sm:$0xff]
    %v341 = vld [vmem:[#allocation7 + $0x134] sm:$0xf]
    %v342 = vld [vmem:[#allocation7 + $0x138] sm:$0xff]
    %v343 = vld [vmem:[#allocation7 + $0x140] sm:$0xf]
    %v344 = vld [vmem:[#allocation7 + $0x144] sm:$0xff]
    %v345 = vld [vmem:[#allocation7 + $0x14c] sm:$0xf]
    %v346 = vld [vmem:[#allocation7 + $0x150] sm:$0xff]
    %v347 = vld [vmem:[#allocation7 + $0x158] sm:$0xf]
    %v348 = vld [vmem:[#allocation7 + $0x15c] sm:$0xff]
    %v349 = vld [vmem:[#allocation7 + $0x164] sm:$0xf]
    %v350 = vld [vmem:[#allocation7 + $0x168] sm:$0xff]
    %v351 = vld [vmem:[#allocation7 + $0x170] sm:$0xf]
    %v352 = vld [vmem:[#allocation7 + $0x174] sm:$0xff]
    %v353 = vld [vmem:[#allocation7 + $0x17c] sm:$0xf]
    %v354 = vld [vmem:[#allocation7 + $0x180] sm:$0xff]
    %v355 = vld [vmem:[#allocation7 + $0x188] sm:$0xf]
    %v356 = vld [vmem:[#allocation7 + $0x18c] sm:$0xff]
    %v357 = vld [vmem:[#allocation7 + $0x194] sm:$0xf]
    %v358 = vld [vmem:[#allocation7 + $0x198] sm:$0xff]
    %v359 = vld [vmem:[#allocation7 + $0x1a0] sm:$0xf]
    %v360 = vld [vmem:[#allocation7 + $0x1a4] sm:$0xff]
    %v361 = vld [vmem:[#allocation7 + $0x1ac] sm:$0xf]
    %v362 = vld [vmem:[#allocation7 + $0x1b0] sm:$0xff]
    %v363 = vld [vmem:[#allocation7 + $0x1b8] sm:$0xf]
    %v364 = vld [vmem:[#allocation7 + $0x1bc] sm:$0xff]
    %v365 = vld [vmem:[#allocation7 + $0x1c4] sm:$0xf]
    %v366 = vld [vmem:[#allocation7 + $0x1c8] sm:$0xff]
    %v367 = vld [vmem:[#allocation7 + $0x1d0] sm:$0xf]
    %v368 = vld [vmem:[#allocation7 + $0x1d4] sm:$0xff]
    %v369 = vld [vmem:[#allocation7 + $0x1dc] sm:$0xf]
    %v370 = vld [vmem:[#allocation7 + $0x1e0] sm:$0xff]
    %v371 = vld [vmem:[#allocation7 + $0x1e8] sm:$0xf]
    %v372 = vld [vmem:[#allocation7 + $0x1ec] sm:$0xff]
    %v373 = vld [vmem:[#allocation7 + $0x1f4] sm:$0xf]
    %v374 = vld [vmem:[#allocation7 + $0x1f8] sm:$0xff]
    %v375 = vld [vmem:[#allocation7 + $0x200] sm:$0xf]
    %v376 = vld [vmem:[#allocation7 + $0x204] sm:$0xff]
    %v377 = vld [vmem:[#allocation7 + $0x20c] sm:$0xf]
    %v378 = vld [vmem:[#allocation7 + $0x210] sm:$0xff]
    %v379 = vld [vmem:[#allocation7 + $0x218] sm:$0xf]
    %v380 = vld [vmem:[#allocation7 + $0x21c] sm:$0xff]
    %v381 = vld [vmem:[#allocation7 + $0x224] sm:$0xf]
    %v382 = vld [vmem:[#allocation7 + $0x228] sm:$0xff]
    %v383 = vld [vmem:[#allocation7 + $0x230] sm:$0xf]
    %v384 = vld [vmem:[#allocation7 + $0x234] sm:$0xff]
    %v385 = vld [vmem:[#allocation7 + $0x23c] sm:$0xf]
    %v386 = vld [vmem:[#allocation7 + $0x240] sm:$0xff]
    %v387 = vld [vmem:[#allocation7 + $0x248] sm:$0xf]
    %v388 = vld [vmem:[#allocation7 + $0x24c] sm:$0xff]
    %v389 = vld [vmem:[#allocation7 + $0x254] sm:$0xf]
    %v390 = vld [vmem:[#allocation7 + $0x258] sm:$0xff]
    %v391 = vld [vmem:[#allocation7 + $0x260] sm:$0xf]
    %v392 = vld [vmem:[#allocation7 + $0x264] sm:$0xff]
    %v393 = vld [vmem:[#allocation7 + $0x26c] sm:$0xf]
    %v394 = vld [vmem:[#allocation7 + $0x270] sm:$0xff]
    %v395 = vld [vmem:[#allocation7 + $0x278] sm:$0xf]
    %v396 = vld [vmem:[#allocation7 + $0x27c] sm:$0xff]
    %v397 = vld [vmem:[#allocation7 + $0x284] sm:$0xf]
    %v398 = vld [vmem:[#allocation7 + $0x288] sm:$0xff]
    %v399 = vld [vmem:[#allocation7 + $0x290] sm:$0xf]
    %v400 = vld [vmem:[#allocation7 + $0x294] sm:$0xff]
    %v401 = vld [vmem:[#allocation7 + $0x29c] sm:$0xf]
    %v402 = vld [vmem:[#allocation7 + $0x2a0] sm:$0xff]
    %v403 = vld [vmem:[#allocation7 + $0x2a8] sm:$0xf]
    %v404 = vld [vmem:[#allocation7 + $0x2ac] sm:$0xff]
    %v405 = vld [vmem:[#allocation7 + $0x2b4] sm:$0xf]
    %v406 = vld [vmem:[#allocation7 + $0x2b8] sm:$0xff]
    %v407 = vld [vmem:[#allocation7 + $0x2c0] sm:$0xf]
    %v408 = vld [vmem:[#allocation7 + $0x2c4] sm:$0xff]
    %v409 = vld [vmem:[#allocation7 + $0x2cc] sm:$0xf]
    %v410 = vld [vmem:[#allocation7 + $0x2d0] sm:$0xff]
    %v411 = vld [vmem:[#allocation7 + $0x2d8] sm:$0xf]
    %v412 = vld [vmem:[#allocation7 + $0x2dc] sm:$0xff]
    %v413 = vld [vmem:[#allocation7 + $0x2e4] sm:$0xf]
    %v414 = vld [vmem:[#allocation7 + $0x2e8] sm:$0xff]
    %v415 = vld [vmem:[#allocation7 + $0x2f0] sm:$0xf]
    %v416 = vld [vmem:[#allocation7 + $0x2f4] sm:$0xff]
    %v417 = vld [vmem:[#allocation7 + $0x2fc] sm:$0xf]
    %v418 = vld [vmem:[%s4] sm:$0x7]
    %v420 = vlaneseq
    %v421 = vshrl.u32 %v420, 7
    %v422 = vsub.s32 0, %v421
    %v423 = vrot.slane %v418, %v422
    %v424 = vlaneseq
    %v425 = vshrl.u32 %v424, 7
    %v426 = vsub.s32 1, %v425
    %v427 = vrot.slane %v418, %v426
    %v428 = vlaneseq
    %v429 = vshrl.u32 %v428, 7
    %v430 = vsub.s32 2, %v429
    %v431 = vrot.slane %v418, %v430
    %v563 = vunpack.c.l.b16 %v290
    %v564 = vunpack.c.h.b16 %v290
    %v565 = vunpack.c.l.b16 %v291
    %v566 = vunpack.c.l.b16 %v292
    %v567 = vunpack.c.h.b16 %v292
    %v568 = vunpack.c.l.b16 %v293
    %v569 = vunpack.c.l.b16 %v294
    %v570 = vunpack.c.h.b16 %v294
    %v571 = vunpack.c.l.b16 %v295
    %v572 = vunpack.c.l.b16 %v296
    %v573 = vunpack.c.h.b16 %v296
    %v574 = vunpack.c.l.b16 %v297
    %v575 = vunpack.c.l.b16 %v298
    %v576 = vunpack.c.h.b16 %v298
    %v577 = vunpack.c.l.b16 %v299
    %v578 = vunpack.c.l.b16 %v300
    %v579 = vunpack.c.h.b16 %v300
    %v580 = vunpack.c.l.b16 %v301
    %v581 = vunpack.c.l.b16 %v302
    %v582 = vunpack.c.h.b16 %v302
    %v583 = vunpack.c.l.b16 %v303
    %v584 = vunpack.c.l.b16 %v304
    %v585 = vunpack.c.h.b16 %v304
    %v586 = vunpack.c.l.b16 %v305
    %v587 = vunpack.c.l.b16 %v306
    %v588 = vunpack.c.h.b16 %v306
    %v589 = vunpack.c.l.b16 %v307
    %v590 = vunpack.c.l.b16 %v308
    %v591 = vunpack.c.h.b16 %v308
    %v592 = vunpack.c.l.b16 %v309
    %v593 = vunpack.c.l.b16 %v310
    %v594 = vunpack.c.h.b16 %v310
    %v595 = vunpack.c.l.b16 %v311
    %v596 = vunpack.c.l.b16 %v312
    %v597 = vunpack.c.h.b16 %v312
    %v598 = vunpack.c.l.b16 %v313
    %v599 = vunpack.c.l.b16 %v314
    %v600 = vunpack.c.h.b16 %v314
    %v601 = vunpack.c.l.b16 %v315
    %v602 = vunpack.c.l.b16 %v316
    %v603 = vunpack.c.h.b16 %v316
    %v604 = vunpack.c.l.b16 %v317
    %v605 = vunpack.c.l.b16 %v318
    %v606 = vunpack.c.h.b16 %v318
    %v607 = vunpack.c.l.b16 %v319
    %v608 = vunpack.c.l.b16 %v320
    %v609 = vunpack.c.h.b16 %v320
    %v610 = vunpack.c.l.b16 %v321
    %v611 = vunpack.c.l.b16 %v322
    %v612 = vunpack.c.h.b16 %v322
    %v613 = vunpack.c.l.b16 %v323
    %v614 = vunpack.c.l.b16 %v324
    %v615 = vunpack.c.h.b16 %v324
    %v616 = vunpack.c.l.b16 %v325
    %v617 = vunpack.c.l.b16 %v326
    %v618 = vunpack.c.h.b16 %v326
    %v619 = vunpack.c.l.b16 %v327
    %v620 = vunpack.c.l.b16 %v328
    %v621 = vunpack.c.h.b16 %v328
    %v622 = vunpack.c.l.b16 %v329
    %v623 = vunpack.c.l.b16 %v330
    %v624 = vunpack.c.h.b16 %v330
    %v625 = vunpack.c.l.b16 %v331
    %v626 = vunpack.c.l.b16 %v332
    %v627 = vunpack.c.h.b16 %v332
    %v628 = vunpack.c.l.b16 %v333
    %v629 = vunpack.c.l.b16 %v334
    %v630 = vunpack.c.h.b16 %v334
    %v631 = vunpack.c.l.b16 %v335
    %v632 = vunpack.c.l.b16 %v336
    %v633 = vunpack.c.h.b16 %v336
    %v634 = vunpack.c.l.b16 %v337
    %v635 = vunpack.c.l.b16 %v338
    %v636 = vunpack.c.h.b16 %v338
    %v637 = vunpack.c.l.b16 %v339
    %v638 = vunpack.c.l.b16 %v340
    %v639 = vunpack.c.h.b16 %v340
    %v640 = vunpack.c.l.b16 %v341
    %v641 = vunpack.c.l.b16 %v342
    %v642 = vunpack.c.h.b16 %v342
    %v643 = vunpack.c.l.b16 %v343
    %v644 = vunpack.c.l.b16 %v344
    %v645 = vunpack.c.h.b16 %v344
    %v646 = vunpack.c.l.b16 %v345
    %v647 = vunpack.c.l.b16 %v346
    %v648 = vunpack.c.h.b16 %v346
    %v649 = vunpack.c.l.b16 %v347
    %v650 = vunpack.c.l.b16 %v348
    %v651 = vunpack.c.h.b16 %v348
    %v652 = vunpack.c.l.b16 %v349
    %v653 = vunpack.c.l.b16 %v350
    %v654 = vunpack.c.h.b16 %v350
    %v655 = vunpack.c.l.b16 %v351
    %v656 = vunpack.c.l.b16 %v352
    %v657 = vunpack.c.h.b16 %v352
    %v658 = vunpack.c.l.b16 %v353
    %v659 = vunpack.c.l.b16 %v354
    %v660 = vunpack.c.h.b16 %v354
    %v661 = vunpack.c.l.b16 %v355
    %v662 = vunpack.c.l.b16 %v356
    %v663 = vunpack.c.h.b16 %v356
    %v664 = vunpack.c.l.b16 %v357
    %v665 = vunpack.c.l.b16 %v358
    %v666 = vunpack.c.h.b16 %v358
    %v667 = vunpack.c.l.b16 %v359
    %v668 = vunpack.c.l.b16 %v360
    %v669 = vunpack.c.h.b16 %v360
    %v670 = vunpack.c.l.b16 %v361
    %v671 = vunpack.c.l.b16 %v362
    %v672 = vunpack.c.h.b16 %v362
    %v673 = vunpack.c.l.b16 %v363
    %v674 = vunpack.c.l.b16 %v364
    %v675 = vunpack.c.h.b16 %v364
    %v676 = vunpack.c.l.b16 %v365
    %v677 = vunpack.c.l.b16 %v366
    %v678 = vunpack.c.h.b16 %v366
    %v679 = vunpack.c.l.b16 %v367
    %v680 = vunpack.c.l.b16 %v368
    %v681 = vunpack.c.h.b16 %v368
    %v682 = vunpack.c.l.b16 %v369
    %v683 = vunpack.c.l.b16 %v370
    %v684 = vunpack.c.h.b16 %v370
    %v685 = vunpack.c.l.b16 %v371
    %v686 = vunpack.c.l.b16 %v372
    %v687 = vunpack.c.h.b16 %v372
    %v688 = vunpack.c.l.b16 %v373
    %v689 = vunpack.c.l.b16 %v374
    %v690 = vunpack.c.h.b16 %v374
    %v691 = vunpack.c.l.b16 %v375
    %v692 = vunpack.c.l.b16 %v376
    %v693 = vunpack.c.h.b16 %v376
    %v694 = vunpack.c.l.b16 %v377
    %v695 = vunpack.c.l.b16 %v378
    %v696 = vunpack.c.h.b16 %v378
    %v697 = vunpack.c.l.b16 %v379
    %v698 = vunpack.c.l.b16 %v380
    %v699 = vunpack.c.h.b16 %v380
    %v700 = vunpack.c.l.b16 %v381
    %v701 = vunpack.c.l.b16 %v382
    %v702 = vunpack.c.h.b16 %v382
    %v703 = vunpack.c.l.b16 %v383
    %v704 = vunpack.c.l.b16 %v384
    %v705 = vunpack.c.h.b16 %v384
    %v706 = vunpack.c.l.b16 %v385
    %v707 = vunpack.c.l.b16 %v386
    %v708 = vunpack.c.h.b16 %v386
    %v709 = vunpack.c.l.b16 %v387
    %v710 = vunpack.c.l.b16 %v388
    %v711 = vunpack.c.h.b16 %v388
    %v712 = vunpack.c.l.b16 %v389
    %v713 = vunpack.c.l.b16 %v390
    %v714 = vunpack.c.h.b16 %v390
    %v715 = vunpack.c.l.b16 %v391
    %v716 = vunpack.c.l.b16 %v392
    %v717 = vunpack.c.h.b16 %v392
    %v718 = vunpack.c.l.b16 %v393
    %v719 = vunpack.c.l.b16 %v394
    %v720 = vunpack.c.h.b16 %v394
    %v721 = vunpack.c.l.b16 %v395
    %v722 = vunpack.c.l.b16 %v396
    %v723 = vunpack.c.h.b16 %v396
    %v724 = vunpack.c.l.b16 %v397
    %v725 = vunpack.c.l.b16 %v398
    %v726 = vunpack.c.h.b16 %v398
    %v727 = vunpack.c.l.b16 %v399
    %v728 = vunpack.c.l.b16 %v400
    %v729 = vunpack.c.h.b16 %v400
    %v730 = vunpack.c.l.b16 %v401
    %v731 = vunpack.c.l.b16 %v402
    %v732 = vunpack.c.h.b16 %v402
    %v733 = vunpack.c.l.b16 %v403
    %v734 = vunpack.c.l.b16 %v404
    %v735 = vunpack.c.h.b16 %v404
    %v736 = vunpack.c.l.b16 %v405
    %v737 = vunpack.c.l.b16 %v406
    %v738 = vunpack.c.h.b16 %v406
    %v739 = vunpack.c.l.b16 %v407
    %v740 = vunpack.c.l.b16 %v408
    %v741 = vunpack.c.h.b16 %v408
    %v742 = vunpack.c.l.b16 %v409
    %v743 = vunpack.c.l.b16 %v410
    %v744 = vunpack.c.h.b16 %v410
    %v745 = vunpack.c.l.b16 %v411
    %v746 = vunpack.c.l.b16 %v412
    %v747 = vunpack.c.h.b16 %v412
    %v748 = vunpack.c.l.b16 %v413
    %v749 = vunpack.c.l.b16 %v414
    %v750 = vunpack.c.h.b16 %v414
    %v751 = vunpack.c.l.b16 %v415
    %v752 = vunpack.c.l.b16 %v416
    %v753 = vunpack.c.h.b16 %v416
    %v754 = vunpack.c.l.b16 %v417
    %v755 = vpack.c.b16 %v566, %v563
    %v756 = vpack.c.b16 %v567, %v564
    %v757 = vpack.c.b16 %v568, %v565
    %v758 = vpack.c.b16 %v572, %v569
    %v759 = vpack.c.b16 %v573, %v570
    %v760 = vpack.c.b16 %v574, %v571
    %v761 = vpack.c.b16 %v578, %v575
    %v762 = vpack.c.b16 %v579, %v576
    %v763 = vpack.c.b16 %v580, %v577
    %v764 = vpack.c.b16 %v584, %v581
    %v765 = vpack.c.b16 %v585, %v582
    %v766 = vpack.c.b16 %v586, %v583
    %v767 = vpack.c.b16 %v590, %v587
    %v768 = vpack.c.b16 %v591, %v588
    %v769 = vpack.c.b16 %v592, %v589
    %v770 = vpack.c.b16 %v596, %v593
    %v771 = vpack.c.b16 %v597, %v594
    %v772 = vpack.c.b16 %v598, %v595
    %v773 = vpack.c.b16 %v602, %v599
    %v774 = vpack.c.b16 %v603, %v600
    %v775 = vpack.c.b16 %v604, %v601
    %v776 = vpack.c.b16 %v608, %v605
    %v777 = vpack.c.b16 %v609, %v606
    %v778 = vpack.c.b16 %v610, %v607
    %v779 = vpack.c.b16 %v614, %v611
    %v780 = vpack.c.b16 %v615, %v612
    %v781 = vpack.c.b16 %v616, %v613
    %v782 = vpack.c.b16 %v620, %v617
    %v783 = vpack.c.b16 %v621, %v618
    %v784 = vpack.c.b16 %v622, %v619
    %v785 = vpack.c.b16 %v626, %v623
    %v786 = vpack.c.b16 %v627, %v624
    %v787 = vpack.c.b16 %v628, %v625
    %v788 = vpack.c.b16 %v632, %v629
    %v789 = vpack.c.b16 %v633, %v630
    %v790 = vpack.c.b16 %v634, %v631
    %v791 = vpack.c.b16 %v638, %v635
    %v792 = vpack.c.b16 %v639, %v636
    %v793 = vpack.c.b16 %v640, %v637
    %v794 = vpack.c.b16 %v644, %v641
    %v795 = vpack.c.b16 %v645, %v642
    %v796 = vpack.c.b16 %v646, %v643
    %v797 = vpack.c.b16 %v650, %v647
    %v798 = vpack.c.b16 %v651, %v648
    %v799 = vpack.c.b16 %v652, %v649
    %v800 = vpack.c.b16 %v656, %v653
    %v801 = vpack.c.b16 %v657, %v654
    %v802 = vpack.c.b16 %v658, %v655
    %v803 = vpack.c.b16 %v662, %v659
    %v804 = vpack.c.b16 %v663, %v660
    %v805 = vpack.c.b16 %v664, %v661
    %v806 = vpack.c.b16 %v668, %v665
    %v807 = vpack.c.b16 %v669, %v666
    %v808 = vpack.c.b16 %v670, %v667
    %v809 = vpack.c.b16 %v674, %v671
    %v810 = vpack.c.b16 %v675, %v672
    %v811 = vpack.c.b16 %v676, %v673
    %v812 = vpack.c.b16 %v680, %v677
    %v813 = vpack.c.b16 %v681, %v678
    %v814 = vpack.c.b16 %v682, %v679
    %v815 = vpack.c.b16 %v686, %v683
    %v816 = vpack.c.b16 %v687, %v684
    %v817 = vpack.c.b16 %v688, %v685
    %v818 = vpack.c.b16 %v692, %v689
    %v819 = vpack.c.b16 %v693, %v690
    %v820 = vpack.c.b16 %v694, %v691
    %v821 = vpack.c.b16 %v698, %v695
    %v822 = vpack.c.b16 %v699, %v696
    %v823 = vpack.c.b16 %v700, %v697
    %v824 = vpack.c.b16 %v704, %v701
    %v825 = vpack.c.b16 %v705, %v702
    %v826 = vpack.c.b16 %v706, %v703
    %v827 = vpack.c.b16 %v710, %v707
    %v828 = vpack.c.b16 %v711, %v708
    %v829 = vpack.c.b16 %v712, %v709
    %v830 = vpack.c.b16 %v716, %v713
    %v831 = vpack.c.b16 %v717, %v714
    %v832 = vpack.c.b16 %v718, %v715
    %v833 = vpack.c.b16 %v722, %v719
    %v834 = vpack.c.b16 %v723, %v720
    %v835 = vpack.c.b16 %v724, %v721
    %v836 = vpack.c.b16 %v728, %v725
    %v837 = vpack.c.b16 %v729, %v726
    %v838 = vpack.c.b16 %v730, %v727
    %v839 = vpack.c.b16 %v734, %v731
    %v840 = vpack.c.b16 %v735, %v732
    %v841 = vpack.c.b16 %v736, %v733
    %v842 = vpack.c.b16 %v740, %v737
    %v843 = vpack.c.b16 %v741, %v738
    %v844 = vpack.c.b16 %v742, %v739
    %v845 = vpack.c.b16 %v746, %v743
    %v846 = vpack.c.b16 %v747, %v744
    %v847 = vpack.c.b16 %v748, %v745
    %v848 = vpack.c.b16 %v752, %v749
    %v849 = vpack.c.b16 %v753, %v750
    %v850 = vpack.c.b16 %v754, %v751
    %947 = vmatprep.subr.bf16.mxu0 %v756
    %948 = vmatpush1.bf16.msra.mxu0 %v755
    %949 = vmatprep.subr.bf16.mxu0 %v759
    %950 = vmatpush1.bf16.msra.mxu0 %v758
    %951 = vmatprep.subr.bf16.mxu0 %v762
    %952 = vmatpush1.bf16.msra.mxu0 %v761
    %953 = vmatprep.subr.bf16.mxu0 %v765
    %954 = vmatpush1.bf16.msra.mxu0 %v764
    %955 = vmatprep.subr.bf16.mxu0 %v768
    %956 = vmatpush1.bf16.msra.mxu0 %v767
    %957 = vmatprep.subr.bf16.mxu0 %v771
    %958 = vmatpush1.bf16.msra.mxu0 %v770
    %959 = vmatprep.subr.bf16.mxu0 %v774
    %960 = vmatpush1.bf16.msra.mxu0 %v773
    %961 = vmatprep.subr.bf16.mxu0 %v777
    %962 = vmatpush1.bf16.msra.mxu0 %v776
    %963 = vmatprep.subr.bf16.mxu0 %v780
    %964 = vmatpush1.bf16.msra.mxu0 %v779
    %965 = vmatprep.subr.bf16.mxu0 %v783
    %966 = vmatpush1.bf16.msra.mxu0 %v782
    %967 = vmatprep.subr.bf16.mxu0 %v786
    %968 = vmatpush1.bf16.msra.mxu0 %v785
    %969 = vmatprep.subr.bf16.mxu0 %v789
    %970 = vmatpush1.bf16.msra.mxu0 %v788
    %971 = vmatprep.subr.bf16.mxu0 %v792
    %972 = vmatpush1.bf16.msra.mxu0 %v791
    %973 = vmatprep.subr.bf16.mxu0 %v795
    %974 = vmatpush1.bf16.msra.mxu0 %v794
    %975 = vmatprep.subr.bf16.mxu0 %v798
    %976 = vmatpush1.bf16.msra.mxu0 %v797
    %977 = vmatprep.subr.bf16.mxu0 %v801
    %978 = vmatpush1.bf16.msra.mxu0 %v800
    %979 = vmatprep.mubr.bf16.mxu0 %v287
    %980 = vmatmul.mubr.bf16.gmra.mrb[0].mxu0 %v286
    %v981 = vpop.f32.mrb[0].mxu0
    %v982 = vadd.f32 %v423, %v981
    %v983 = vpop.f32.mrb[0].mxu0
    %v984 = vadd.f32 %v427, %v983
    %v985 = vpop.f32.mrb[0].mxu0
    %v986 = vpop.f32.mrb[0].mxu0
    %987 = vdwg.mxu0
    %988 = vmatprep.subr.bf16.mxu0 %v804
    %989 = vmatpush1.bf16.msra.mxu0 %v803
    %990 = vmatprep.subr.bf16.mxu0 %v807
    %991 = vmatpush1.bf16.msra.mxu0 %v806
    %992 = vmatprep.subr.bf16.mxu0 %v810
    %993 = vmatpush1.bf16.msra.mxu0 %v809
    %994 = vmatprep.subr.bf16.mxu0 %v813
    %995 = vmatpush1.bf16.msra.mxu0 %v812
    %996 = vmatprep.subr.bf16.mxu0 %v816
    %997 = vmatpush1.bf16.msra.mxu0 %v815
    %998 = vmatprep.subr.bf16.mxu0 %v819
    %999 = vmatpush1.bf16.msra.mxu0 %v818
    %1000 = vmatprep.subr.bf16.mxu0 %v822
    %1001 = vmatpush1.bf16.msra.mxu0 %v821
    %1002 = vmatprep.subr.bf16.mxu0 %v825
    %1003 = vmatpush1.bf16.msra.mxu0 %v824
    %1004 = vmatprep.subr.bf16.mxu0 %v828
    %1005 = vmatpush1.bf16.msra.mxu0 %v827
    %1006 = vmatprep.subr.bf16.mxu0 %v831
    %1007 = vmatpush1.bf16.msra.mxu0 %v830
    %1008 = vmatprep.subr.bf16.mxu0 %v834
    %1009 = vmatpush1.bf16.msra.mxu0 %v833
    %1010 = vmatprep.subr.bf16.mxu0 %v837
    %1011 = vmatpush1.bf16.msra.mxu0 %v836
    %1012 = vmatprep.subr.bf16.mxu0 %v840
    %1013 = vmatpush1.bf16.msra.mxu0 %v839
    %1014 = vmatprep.subr.bf16.mxu0 %v843
    %1015 = vmatpush1.bf16.msra.mxu0 %v842
    %1016 = vmatprep.subr.bf16.mxu0 %v846
    %1017 = vmatpush1.bf16.msra.mxu0 %v845
    %1018 = vmatprep.subr.bf16.mxu0 %v849
    %1019 = vmatpush1.bf16.msra.mxu0 %v848
    %1020 = vmatprep.mubr.bf16.mxu0 %v289
    %1021 = vmatmul.mubr.bf16.gmra.mrb[0].mxu0 %v288
    %v1022 = vpop.f32.mrb[0].mxu0
    %v1023 = vadd.f32 %v982, %v1022
    %v1024 = vpop.f32.mrb[0].mxu0
    %v1025 = vadd.f32 %v984, %v1024
    %v1026 = vpop.f32.mrb[0].mxu0
    %v1027 = vpop.f32.mrb[0].mxu0
    %1028 = vdwg.mxu0
    %1029 = vmatprep.subr.bf16.mxu0 0
    %1030 = vmatpush1.bf16.msra.mxu0 %v757
    %1031 = vmatprep.subr.bf16.mxu0 0
    %1032 = vmatpush1.bf16.msra.mxu0 %v760
    %1033 = vmatprep.subr.bf16.mxu0 0
    %1034 = vmatpush1.bf16.msra.mxu0 %v763
    %1035 = vmatprep.subr.bf16.mxu0 0
    %1036 = vmatpush1.bf16.msra.mxu0 %v766
    %1037 = vmatprep.subr.bf16.mxu0 0
    %1038 = vmatpush1.bf16.msra.mxu0 %v769
    %1039 = vmatprep.subr.bf16.mxu0 0
    %1040 = vmatpush1.bf16.msra.mxu0 %v772
    %1041 = vmatprep.subr.bf16.mxu0 0
    %1042 = vmatpush1.bf16.msra.mxu0 %v775
    %1043 = vmatprep.subr.bf16.mxu0 0
    %1044 = vmatpush1.bf16.msra.mxu0 %v778
    %1045 = vmatprep.subr.bf16.mxu0 0
    %1046 = vmatpush1.bf16.msra.mxu0 %v781
    %1047 = vmatprep.subr.bf16.mxu0 0
    %1048 = vmatpush1.bf16.msra.mxu0 %v784
    %1049 = vmatprep.subr.bf16.mxu0 0
    %1050 = vmatpush1.bf16.msra.mxu0 %v787
    %1051 = vmatprep.subr.bf16.mxu0 0
    %1052 = vmatpush1.bf16.msra.mxu0 %v790
    %1053 = vmatprep.subr.bf16.mxu0 0
    %1054 = vmatpush1.bf16.msra.mxu0 %v793
    %1055 = vmatprep.subr.bf16.mxu0 0
    %1056 = vmatpush1.bf16.msra.mxu0 %v796
    %1057 = vmatprep.subr.bf16.mxu0 0
    %1058 = vmatpush1.bf16.msra.mxu0 %v799
    %1059 = vmatprep.subr.bf16.mxu0 0
    %1060 = vmatpush1.bf16.msra.mxu0 %v802
    %1061 = vmatprep.mubr.bf16.mxu0 %v287
    %1062 = vmatmul.mubr.bf16.gmra.mrb[0].mxu0 %v286
    %v1063 = vpop.f32.mrb[0].mxu0
    %v1064 = vadd.f32 %v431, %v1063
    %v1065 = vpop.f32.mrb[0].mxu0
    %v1066 = vpop.f32.mrb[0].mxu0
    %v1067 = vpop.f32.mrb[0].mxu0
    %1068 = vdwg.mxu0
    %1069 = vmatprep.subr.bf16.mxu0 0
    %1070 = vmatpush1.bf16.msra.mxu0 %v805
    %1071 = vmatprep.subr.bf16.mxu0 0
    %1072 = vmatpush1.bf16.msra.mxu0 %v808
    %1073 = vmatprep.subr.bf16.mxu0 0
    %1074 = vmatpush1.bf16.msra.mxu0 %v811
    %1075 = vmatprep.subr.bf16.mxu0 0
    %1076 = vmatpush1.bf16.msra.mxu0 %v814
    %1077 = vmatprep.subr.bf16.mxu0 0
    %1078 = vmatpush1.bf16.msra.mxu0 %v817
    %1079 = vmatprep.subr.bf16.mxu0 0
    %1080 = vmatpush1.bf16.msra.mxu0 %v820
    %1081 = vmatprep.subr.bf16.mxu0 0
    %1082 = vmatpush1.bf16.msra.mxu0 %v823
    %1083 = vmatprep.subr.bf16.mxu0 0
    %1084 = vmatpush1.bf16.msra.mxu0 %v826
    %1085 = vmatprep.subr.bf16.mxu0 0
    %1086 = vmatpush1.bf16.msra.mxu0 %v829
    %1087 = vmatprep.subr.bf16.mxu0 0
    %1088 = vmatpush1.bf16.msra.mxu0 %v832
    %1089 = vmatprep.subr.bf16.mxu0 0
    %1090 = vmatpush1.bf16.msra.mxu0 %v835
    %1091 = vmatprep.subr.bf16.mxu0 0
    %1092 = vmatpush1.bf16.msra.mxu0 %v838
    %1093 = vmatprep.subr.bf16.mxu0 0
    %1094 = vmatpush1.bf16.msra.mxu0 %v841
    %1095 = vmatprep.subr.bf16.mxu0 0
    %1096 = vmatpush1.bf16.msra.mxu0 %v844
    %1097 = vmatprep.subr.bf16.mxu0 0
    %1098 = vmatpush1.bf16.msra.mxu0 %v847
    %1099 = vmatprep.subr.bf16.mxu0 0
    %1100 = vmatpush1.bf16.msra.mxu0 %v850
    %1101 = vmatprep.mubr.bf16.mxu0 %v289
    %1102 = vmatmul.mubr.bf16.gmra.mrb[0].mxu0 %v288
    %v1103 = vpop.f32.mrb[0].mxu0
    %v1104 = vadd.f32 %v1064, %v1103
    %v1105 = vpop.f32.mrb[0].mxu0
    %v1106 = vpop.f32.mrb[0].mxu0
    %v1107 = vpop.f32.mrb[0].mxu0
    %1108 = vdwg.mxu0
    %v1109 = vmax.f32 %v1023, 0.0
    %v1110 = vmax.f32 %v1025, 0.0
    %v1111 = vmax.f32 %v1104, 0.0
    %v1112 = vpack.c.bf16 %v1109, %v1109
    %v1113 = vpack.c.bf16 %v1110, %v1110
    %v1114 = vpack.c.bf16 %v1111, %v1111
    %v1115 = vld [vmem:[#allocation8] sm:$0xff]
    %v1116 = vld [vmem:[#allocation8 + $0x8] sm:$0xff]
    %v1117 = vld [vmem:[#allocation8 + $0x10] sm:$0xff]
    %v1118 = vld [vmem:[#allocation8 + $0x18] sm:$0xff]
    %v1119 = vld [vmem:[#allocation8 + $0x20] sm:$0xff]
    %v1120 = vld [vmem:[#allocation8 + $0x28] sm:$0xff]
    %v1121 = vld [vmem:[#allocation8 + $0x30] sm:$0xff]
    %v1122 = vld [vmem:[#allocation8 + $0x38] sm:$0xff]
    %v1123 = vld [vmem:[#allocation8 + $0x40] sm:$0xff]
    %v1124 = vld [vmem:[#allocation8 + $0x48] sm:$0xff]
    %v1125 = vld [vmem:[#allocation8 + $0x50] sm:$0xff]
    %v1126 = vld [vmem:[#allocation8 + $0x58] sm:$0xff]
    %v1127 = vld [vmem:[#allocation8 + $0x60] sm:$0xff]
    %v1128 = vld [vmem:[#allocation8 + $0x68] sm:$0xff]
    %v1129 = vld [vmem:[#allocation8 + $0x70] sm:$0xff]
    %v1130 = vld [vmem:[#allocation8 + $0x78] sm:$0xff]
    %v1131 = vld [vmem:[#allocation8 + $0x80] sm:$0xff]
    %v1132 = vld [vmem:[#allocation8 + $0x88] sm:$0xff]
    %v1133 = vld [vmem:[#allocation8 + $0x90] sm:$0xff]
    %v1134 = vld [vmem:[#allocation8 + $0x98] sm:$0xff]
    %v1135 = vld [vmem:[#allocation8 + $0xa0] sm:$0xff]
    %v1136 = vld [vmem:[#allocation8 + $0xa8] sm:$0xff]
    %v1137 = vld [vmem:[#allocation8 + $0xb0] sm:$0xff]
    %v1138 = vld [vmem:[#allocation8 + $0xb8] sm:$0xff]
    %v1139 = vld [vmem:[#allocation8 + $0xc0] sm:$0xff]
    %v1140 = vld [vmem:[#allocation8 + $0xc8] sm:$0xff]
    %v1141 = vld [vmem:[#allocation8 + $0xd0] sm:$0xff]
    %v1142 = vld [vmem:[#allocation8 + $0xd8] sm:$0xff]
    %v1143 = vld [vmem:[#allocation8 + $0xe0] sm:$0xff]
    %v1144 = vld [vmem:[#allocation8 + $0xe8] sm:$0xff]
    %v1145 = vld [vmem:[#allocation8 + $0xf0] sm:$0xff]
    %v1146 = vld [vmem:[#allocation8 + $0xf8] sm:$0xff]
    %v1147 = vld [vmem:[#allocation8 + $0x100] sm:$0xff]
    %v1148 = vld [vmem:[#allocation8 + $0x108] sm:$0xff]
    %v1149 = vld [vmem:[#allocation8 + $0x110] sm:$0xff]
    %v1150 = vld [vmem:[#allocation8 + $0x118] sm:$0xff]
    %v1151 = vld [vmem:[#allocation8 + $0x120] sm:$0xff]
    %v1152 = vld [vmem:[#allocation8 + $0x128] sm:$0xff]
    %v1153 = vld [vmem:[#allocation8 + $0x130] sm:$0xff]
    %v1154 = vld [vmem:[#allocation8 + $0x138] sm:$0xff]
    %v1155 = vld [vmem:[#allocation8 + $0x140] sm:$0xff]
    %v1156 = vld [vmem:[#allocation8 + $0x148] sm:$0xff]
    %v1157 = vld [vmem:[#allocation8 + $0x150] sm:$0xff]
    %v1158 = vld [vmem:[#allocation8 + $0x158] sm:$0xff]
    %v1159 = vld [vmem:[#allocation8 + $0x160] sm:$0xff]
    %v1160 = vld [vmem:[#allocation8 + $0x168] sm:$0xff]
    %v1161 = vld [vmem:[#allocation8 + $0x170] sm:$0xff]
    %v1162 = vld [vmem:[#allocation8 + $0x178] sm:$0xff]
    %v1163 = vld [vmem:[%s6] sm:$0x3]
    %v1165 = vlaneseq
    %v1166 = vshrl.u32 %v1165, 7
    %v1167 = vsub.s32 0, %v1166
    %v1168 = vrot.slane %v1163, %v1167
    %v1169 = vlaneseq
    %v1170 = vshrl.u32 %v1169, 7
    %v1171 = vsub.s32 1, %v1170
    %v1172 = vrot.slane %v1163, %v1171
    %v1223 = vunpack.c.l.b16 %v1115
    %v1224 = vunpack.c.h.b16 %v1115
    %v1225 = vunpack.c.l.b16 %v1116
    %v1226 = vunpack.c.h.b16 %v1116
    %v1227 = vunpack.c.l.b16 %v1117
    %v1228 = vunpack.c.h.b16 %v1117
    %v1229 = vunpack.c.l.b16 %v1118
    %v1230 = vunpack.c.h.b16 %v1118
    %v1231 = vunpack.c.l.b16 %v1119
    %v1232 = vunpack.c.h.b16 %v1119
    %v1233 = vunpack.c.l.b16 %v1120
    %v1234 = vunpack.c.h.b16 %v1120
    %v1235 = vunpack.c.l.b16 %v1121
    %v1236 = vunpack.c.h.b16 %v1121
    %v1237 = vunpack.c.l.b16 %v1122
    %v1238 = vunpack.c.h.b16 %v1122
    %v1239 = vunpack.c.l.b16 %v1123
    %v1240 = vunpack.c.h.b16 %v1123
    %v1241 = vunpack.c.l.b16 %v1124
    %v1242 = vunpack.c.h.b16 %v1124
    %v1243 = vunpack.c.l.b16 %v1125
    %v1244 = vunpack.c.h.b16 %v1125
    %v1245 = vunpack.c.l.b16 %v1126
    %v1246 = vunpack.c.h.b16 %v1126
    %v1247 = vunpack.c.l.b16 %v1127
    %v1248 = vunpack.c.h.b16 %v1127
    %v1249 = vunpack.c.l.b16 %v1128
    %v1250 = vunpack.c.h.b16 %v1128
    %v1251 = vunpack.c.l.b16 %v1129
    %v1252 = vunpack.c.h.b16 %v1129
    %v1253 = vunpack.c.l.b16 %v1130
    %v1254 = vunpack.c.h.b16 %v1130
    %v1255 = vunpack.c.l.b16 %v1131
    %v1256 = vunpack.c.h.b16 %v1131
    %v1257 = vunpack.c.l.b16 %v1132
    %v1258 = vunpack.c.h.b16 %v1132
    %v1259 = vunpack.c.l.b16 %v1133
    %v1260 = vunpack.c.h.b16 %v1133
    %v1261 = vunpack.c.l.b16 %v1134
    %v1262 = vunpack.c.h.b16 %v1134
    %v1263 = vunpack.c.l.b16 %v1135
    %v1264 = vunpack.c.h.b16 %v1135
    %v1265 = vunpack.c.l.b16 %v1136
    %v1266 = vunpack.c.h.b16 %v1136
    %v1267 = vunpack.c.l.b16 %v1137
    %v1268 = vunpack.c.h.b16 %v1137
    %v1269 = vunpack.c.l.b16 %v1138
    %v1270 = vunpack.c.h.b16 %v1138
    %v1271 = vunpack.c.l.b16 %v1139
    %v1272 = vunpack.c.h.b16 %v1139
    %v1273 = vunpack.c.l.b16 %v1140
    %v1274 = vunpack.c.h.b16 %v1140
    %v1275 = vunpack.c.l.b16 %v1141
    %v1276 = vunpack.c.h.b16 %v1141
    %v1277 = vunpack.c.l.b16 %v1142
    %v1278 = vunpack.c.h.b16 %v1142
    %v1279 = vunpack.c.l.b16 %v1143
    %v1280 = vunpack.c.h.b16 %v1143
    %v1281 = vunpack.c.l.b16 %v1144
    %v1282 = vunpack.c.h.b16 %v1144
    %v1283 = vunpack.c.l.b16 %v1145
    %v1284 = vunpack.c.h.b16 %v1145
    %v1285 = vunpack.c.l.b16 %v1146
    %v1286 = vunpack.c.h.b16 %v1146
    %v1287 = vunpack.c.l.b16 %v1147
    %v1288 = vunpack.c.h.b16 %v1147
    %v1289 = vunpack.c.l.b16 %v1148
    %v1290 = vunpack.c.h.b16 %v1148
    %v1291 = vunpack.c.l.b16 %v1149
    %v1292 = vunpack.c.h.b16 %v1149
    %v1293 = vunpack.c.l.b16 %v1150
    %v1294 = vunpack.c.h.b16 %v1150
    %v1295 = vunpack.c.l.b16 %v1151
    %v1296 = vunpack.c.h.b16 %v1151
    %v1297 = vunpack.c.l.b16 %v1152
    %v1298 = vunpack.c.h.b16 %v1152
    %v1299 = vunpack.c.l.b16 %v1153
    %v1300 = vunpack.c.h.b16 %v1153
    %v1301 = vunpack.c.l.b16 %v1154
    %v1302 = vunpack.c.h.b16 %v1154
    %v1303 = vunpack.c.l.b16 %v1155
    %v1304 = vunpack.c.h.b16 %v1155
    %v1305 = vunpack.c.l.b16 %v1156
    %v1306 = vunpack.c.h.b16 %v1156
    %v1307 = vunpack.c.l.b16 %v1157
    %v1308 = vunpack.c.h.b16 %v1157
    %v1309 = vunpack.c.l.b16 %v1158
    %v1310 = vunpack.c.h.b16 %v1158
    %v1311 = vunpack.c.l.b16 %v1159
    %v1312 = vunpack.c.h.b16 %v1159
    %v1313 = vunpack.c.l.b16 %v1160
    %v1314 = vunpack.c.h.b16 %v1160
    %v1315 = vunpack.c.l.b16 %v1161
    %v1316 = vunpack.c.h.b16 %v1161
    %v1317 = vunpack.c.l.b16 %v1162
    %v1318 = vunpack.c.h.b16 %v1162
    %v1319 = vpack.c.b16 %v1225, %v1223
    %v1320 = vpack.c.b16 %v1226, %v1224
    %v1321 = vpack.c.b16 %v1229, %v1227
    %v1322 = vpack.c.b16 %v1230, %v1228
    %v1323 = vpack.c.b16 %v1233, %v1231
    %v1324 = vpack.c.b16 %v1234, %v1232
    %v1325 = vpack.c.b16 %v1237, %v1235
    %v1326 = vpack.c.b16 %v1238, %v1236
    %v1327 = vpack.c.b16 %v1241, %v1239
    %v1328 = vpack.c.b16 %v1242, %v1240
    %v1329 = vpack.c.b16 %v1245, %v1243
    %v1330 = vpack.c.b16 %v1246, %v1244
    %v1331 = vpack.c.b16 %v1249, %v1247
    %v1332 = vpack.c.b16 %v1250, %v1248
    %v1333 = vpack.c.b16 %v1253, %v1251
    %v1334 = vpack.c.b16 %v1254, %v1252
    %v1335 = vpack.c.b16 %v1257, %v1255
    %v1336 = vpack.c.b16 %v1258, %v1256
    %v1337 = vpack.c.b16 %v1261, %v1259
    %v1338 = vpack.c.b16 %v1262, %v1260
    %v1339 = vpack.c.b16 %v1265, %v1263
    %v1340 = vpack.c.b16 %v1266, %v1264
    %v1341 = vpack.c.b16 %v1269, %v1267
    %v1342 = vpack.c.b16 %v1270, %v1268
    %v1343 = vpack.c.b16 %v1273, %v1271
    %v1344 = vpack.c.b16 %v1274, %v1272
    %v1345 = vpack.c.b16 %v1277, %v1275
    %v1346 = vpack.c.b16 %v1278, %v1276
    %v1347 = vpack.c.b16 %v1281, %v1279
    %v1348 = vpack.c.b16 %v1282, %v1280
    %v1349 = vpack.c.b16 %v1285, %v1283
    %v1350 = vpack.c.b16 %v1286, %v1284
    %v1351 = vpack.c.b16 %v1289, %v1287
    %v1352 = vpack.c.b16 %v1290, %v1288
    %v1353 = vpack.c.b16 %v1293, %v1291
    %v1354 = vpack.c.b16 %v1294, %v1292
    %v1355 = vpack.c.b16 %v1297, %v1295
    %v1356 = vpack.c.b16 %v1298, %v1296
    %v1357 = vpack.c.b16 %v1301, %v1299
    %v1358 = vpack.c.b16 %v1302, %v1300
    %v1359 = vpack.c.b16 %v1305, %v1303
    %v1360 = vpack.c.b16 %v1306, %v1304
    %v1361 = vpack.c.b16 %v1309, %v1307
    %v1362 = vpack.c.b16 %v1310, %v1308
    %v1363 = vpack.c.b16 %v1313, %v1311
    %v1364 = vpack.c.b16 %v1314, %v1312
    %v1365 = vpack.c.b16 %v1317, %v1315
    %v1366 = vpack.c.b16 %v1318, %v1316
    %1415 = vmatprep.subr.bf16.mxu0 %v1320
    %1416 = vmatpush1.bf16.msra.mxu0 %v1319
    %1417 = vmatprep.subr.bf16.mxu0 %v1322
    %1418 = vmatpush1.bf16.msra.mxu0 %v1321
    %1419 = vmatprep.subr.bf16.mxu0 %v1324
    %1420 = vmatpush1.bf16.msra.mxu0 %v1323
    %1421 = vmatprep.subr.bf16.mxu0 %v1326
    %1422 = vmatpush1.bf16.msra.mxu0 %v1325
    %1423 = vmatprep.subr.bf16.mxu0 %v1328
    %1424 = vmatpush1.bf16.msra.mxu0 %v1327
    %1425 = vmatprep.subr.bf16.mxu0 %v1330
    %1426 = vmatpush1.bf16.msra.mxu0 %v1329
    %1427 = vmatprep.subr.bf16.mxu0 %v1332
    %1428 = vmatpush1.bf16.msra.mxu0 %v1331
    %1429 = vmatprep.subr.bf16.mxu0 %v1334
    %1430 = vmatpush1.bf16.msra.mxu0 %v1333
    %1431 = vmatprep.subr.bf16.mxu0 %v1336
    %1432 = vmatpush1.bf16.msra.mxu0 %v1335
    %1433 = vmatprep.subr.bf16.mxu0 %v1338
    %1434 = vmatpush1.bf16.msra.mxu0 %v1337
    %1435 = vmatprep.subr.bf16.mxu0 %v1340
    %1436 = vmatpush1.bf16.msra.mxu0 %v1339
    %1437 = vmatprep.subr.bf16.mxu0 %v1342
    %1438 = vmatpush1.bf16.msra.mxu0 %v1341
    %1439 = vmatprep.subr.bf16.mxu0 %v1344
    %1440 = vmatpush1.bf16.msra.mxu0 %v1343
    %1441 = vmatprep.subr.bf16.mxu0 %v1346
    %1442 = vmatpush1.bf16.msra.mxu0 %v1345
    %1443 = vmatprep.subr.bf16.mxu0 %v1348
    %1444 = vmatpush1.bf16.msra.mxu0 %v1347
    %1445 = vmatprep.subr.bf16.mxu0 %v1350
    %1446 = vmatpush1.bf16.msra.mxu0 %v1349
    %1447 = vmatprep.mubr.bf16.mxu0 %v1113
    %1448 = vmatmul.mubr.bf16.gmra.mrb[0].mxu0 %v1112
    %v1449 = vpop.f32.mrb[0].mxu0
    %v1450 = vadd.f32 %v1168, %v1449
    %v1451 = vpop.f32.mrb[0].mxu0
    %v1452 = vadd.f32 %v1172, %v1451
    %v1453 = vpop.f32.mrb[0].mxu0
    %v1454 = vpop.f32.mrb[0].mxu0
    %1455 = vdwg.mxu0
    %1456 = vmatprep.subr.bf16.mxu0 %v1352
    %1457 = vmatpush1.bf16.msra.mxu0 %v1351
    %1458 = vmatprep.subr.bf16.mxu0 %v1354
    %1459 = vmatpush1.bf16.msra.mxu0 %v1353
    %1460 = vmatprep.subr.bf16.mxu0 %v1356
    %1461 = vmatpush1.bf16.msra.mxu0 %v1355
    %1462 = vmatprep.subr.bf16.mxu0 %v1358
    %1463 = vmatpush1.bf16.msra.mxu0 %v1357
    %1464 = vmatprep.subr.bf16.mxu0 %v1360
    %1465 = vmatpush1.bf16.msra.mxu0 %v1359
    %1466 = vmatprep.subr.bf16.mxu0 %v1362
    %1467 = vmatpush1.bf16.msra.mxu0 %v1361
    %1468 = vmatprep.subr.bf16.mxu0 %v1364
    %1469 = vmatpush1.bf16.msra.mxu0 %v1363
    %1470 = vmatprep.subr.bf16.mxu0 %v1366
    %1471 = vmatpush1.bf16.msra.mxu0 %v1365
    %1472 = vmatprep.subr.bf16.mxu0 0
    %1473 = vmatpush1.bf16.msra.mxu0 0
    %1474 = vmatprep.subr.bf16.mxu0 0
    %1475 = vmatpush1.bf16.msra.mxu0 0
    %1476 = vmatprep.subr.bf16.mxu0 0
    %1477 = vmatpush1.bf16.msra.mxu0 0
    %1478 = vmatprep.subr.bf16.mxu0 0
    %1479 = vmatpush1.bf16.msra.mxu0 0
    %1480 = vmatprep.subr.bf16.mxu0 0
    %1481 = vmatpush1.bf16.msra.mxu0 0
    %1482 = vmatprep.subr.bf16.mxu0 0
    %1483 = vmatpush1.bf16.msra.mxu0 0
    %1484 = vmatprep.subr.bf16.mxu0 0
    %1485 = vmatpush1.bf16.msra.mxu0 0
    %1486 = vmatprep.subr.bf16.mxu0 0
    %1487 = vmatpush1.bf16.msra.mxu0 0
    %1488 = vmatprep.mubr.bf16.mxu0 0
    %1489 = vmatmul.mubr.bf16.gmra.mrb[0].mxu0 %v1114
    %v1490 = vpop.f32.mrb[0].mxu0
    %v1491 = vadd.f32 %v1450, %v1490
    %v1492 = vpop.f32.mrb[0].mxu0
    %v1493 = vadd.f32 %v1452, %v1492
    %v1494 = vpop.f32.mrb[0].mxu0
    %v1495 = vpop.f32.mrb[0].mxu0
    %1496 = vdwg.mxu0
    %v1497 = vmax.f32 %v1491, 0.0
    %v1498 = vmax.f32 %v1493, 0.0
    %v1499 = vpack.c.bf16 %v1497, %v1497
    %v1500 = vpack.c.bf16 %v1498, %v1498
    %v1501 = vld [vmem:[#allocation10] sm:$0xff]
    %v1502 = vld [vmem:[#allocation10 + $0x8] sm:$0xff]
    %v1503 = vld [vmem:[#allocation10 + $0x10] sm:$0xff]
    %v1504 = vld [vmem:[#allocation10 + $0x18] sm:$0xff]
    %v1505 = vld [vmem:[#allocation10 + $0x20] sm:$0xff]
    %v1506 = vld [vmem:[#allocation10 + $0x28] sm:$0xff]
    %v1507 = vld [vmem:[#allocation10 + $0x30] sm:$0xff]
    %v1508 = vld [vmem:[#allocation10 + $0x38] sm:$0xff]
    %v1509 = vld [vmem:[#allocation10 + $0x40] sm:$0xff]
    %v1510 = vld [vmem:[#allocation10 + $0x48] sm:$0xff]
    %v1511 = vld [vmem:[#allocation10 + $0x50] sm:$0xff]
    %v1512 = vld [vmem:[#allocation10 + $0x58] sm:$0xff]
    %v1513 = vld [vmem:[#allocation10 + $0x60] sm:$0xff]
    %v1514 = vld [vmem:[#allocation10 + $0x68] sm:$0xff]
    %v1515 = vld [vmem:[#allocation10 + $0x70] sm:$0xff]
    %v1516 = vld [vmem:[#allocation10 + $0x78] sm:$0xff]
    %v1517 = vld [vmem:[#allocation10 + $0x80] sm:$0xff]
    %v1518 = vld [vmem:[#allocation10 + $0x88] sm:$0xff]
    %v1519 = vld [vmem:[#allocation10 + $0x90] sm:$0xff]
    %v1520 = vld [vmem:[#allocation10 + $0x98] sm:$0xff]
    %v1521 = vld [vmem:[#allocation10 + $0xa0] sm:$0xff]
    %v1522 = vld [vmem:[#allocation10 + $0xa8] sm:$0xff]
    %v1523 = vld [vmem:[#allocation10 + $0xb0] sm:$0xff]
    %v1524 = vld [vmem:[#allocation10 + $0xb8] sm:$0xff]
    %v1525 = vld [vmem:[#allocation10 + $0xc0] sm:$0xff]
    %v1526 = vld [vmem:[#allocation10 + $0xc8] sm:$0xff]
    %v1527 = vld [vmem:[#allocation10 + $0xd0] sm:$0xff]
    %v1528 = vld [vmem:[#allocation10 + $0xd8] sm:$0xff]
    %v1529 = vld [vmem:[#allocation10 + $0xe0] sm:$0xff]
    %v1530 = vld [vmem:[#allocation10 + $0xe8] sm:$0xff]
    %v1531 = vld [vmem:[#allocation10 + $0xf0] sm:$0xff]
    %v1532 = vld [vmem:[#allocation10 + $0xf8] sm:$0xff]
    %v1533 = vld [vmem:[%s8] sm:$0x3]
    %v1535 = vlaneseq
    %v1536 = vshrl.u32 %v1535, 7
    %v1537 = vsub.s32 0, %v1536
    %v1538 = vrot.slane %v1533, %v1537
    %v1539 = vlaneseq
    %v1540 = vshrl.u32 %v1539, 7
    %v1541 = vsub.s32 1, %v1540
    %v1542 = vrot.slane %v1533, %v1541
    %v1577 = vunpack.c.l.b16 %v1501
    %v1578 = vunpack.c.h.b16 %v1501
    %v1579 = vunpack.c.l.b16 %v1502
    %v1580 = vunpack.c.h.b16 %v1502
    %v1581 = vunpack.c.l.b16 %v1503
    %v1582 = vunpack.c.h.b16 %v1503
    %v1583 = vunpack.c.l.b16 %v1504
    %v1584 = vunpack.c.h.b16 %v1504
    %v1585 = vunpack.c.l.b16 %v1505
    %v1586 = vunpack.c.h.b16 %v1505
    %v1587 = vunpack.c.l.b16 %v1506
    %v1588 = vunpack.c.h.b16 %v1506
    %v1589 = vunpack.c.l.b16 %v1507
    %v1590 = vunpack.c.h.b16 %v1507
    %v1591 = vunpack.c.l.b16 %v1508
    %v1592 = vunpack.c.h.b16 %v1508
    %v1593 = vunpack.c.l.b16 %v1509
    %v1594 = vunpack.c.h.b16 %v1509
    %v1595 = vunpack.c.l.b16 %v1510
    %v1596 = vunpack.c.h.b16 %v1510
    %v1597 = vunpack.c.l.b16 %v1511
    %v1598 = vunpack.c.h.b16 %v1511
    %v1599 = vunpack.c.l.b16 %v1512
    %v1600 = vunpack.c.h.b16 %v1512
    %v1601 = vunpack.c.l.b16 %v1513
    %v1602 = vunpack.c.h.b16 %v1513
    %v1603 = vunpack.c.l.b16 %v1514
    %v1604 = vunpack.c.h.b16 %v1514
    %v1605 = vunpack.c.l.b16 %v1515
    %v1606 = vunpack.c.h.b16 %v1515
    %v1607 = vunpack.c.l.b16 %v1516
    %v1608 = vunpack.c.h.b16 %v1516
    %v1609 = vunpack.c.l.b16 %v1517
    %v1610 = vunpack.c.h.b16 %v1517
    %v1611 = vunpack.c.l.b16 %v1518
    %v1612 = vunpack.c.h.b16 %v1518
    %v1613 = vunpack.c.l.b16 %v1519
    %v1614 = vunpack.c.h.b16 %v1519
    %v1615 = vunpack.c.l.b16 %v1520
    %v1616 = vunpack.c.h.b16 %v1520
    %v1617 = vunpack.c.l.b16 %v1521
    %v1618 = vunpack.c.h.b16 %v1521
    %v1619 = vunpack.c.l.b16 %v1522
    %v1620 = vunpack.c.h.b16 %v1522
    %v1621 = vunpack.c.l.b16 %v1523
    %v1622 = vunpack.c.h.b16 %v1523
    %v1623 = vunpack.c.l.b16 %v1524
    %v1624 = vunpack.c.h.b16 %v1524
    %v1625 = vunpack.c.l.b16 %v1525
    %v1626 = vunpack.c.h.b16 %v1525
    %v1627 = vunpack.c.l.b16 %v1526
    %v1628 = vunpack.c.h.b16 %v1526
    %v1629 = vunpack.c.l.b16 %v1527
    %v1630 = vunpack.c.h.b16 %v1527
    %v1631 = vunpack.c.l.b16 %v1528
    %v1632 = vunpack.c.h.b16 %v1528
    %v1633 = vunpack.c.l.b16 %v1529
    %v1634 = vunpack.c.h.b16 %v1529
    %v1635 = vunpack.c.l.b16 %v1530
    %v1636 = vunpack.c.h.b16 %v1530
    %v1637 = vunpack.c.l.b16 %v1531
    %v1638 = vunpack.c.h.b16 %v1531
    %v1639 = vunpack.c.l.b16 %v1532
    %v1640 = vunpack.c.h.b16 %v1532
    %v1641 = vpack.c.b16 %v1579, %v1577
    %v1642 = vpack.c.b16 %v1580, %v1578
    %v1643 = vpack.c.b16 %v1583, %v1581
    %v1644 = vpack.c.b16 %v1584, %v1582
    %v1645 = vpack.c.b16 %v1587, %v1585
    %v1646 = vpack.c.b16 %v1588, %v1586
    %v1647 = vpack.c.b16 %v1591, %v1589
    %v1648 = vpack.c.b16 %v1592, %v1590
    %v1649 = vpack.c.b16 %v1595, %v1593
    %v1650 = vpack.c.b16 %v1596, %v1594
    %v1651 = vpack.c.b16 %v1599, %v1597
    %v1652 = vpack.c.b16 %v1600, %v1598
    %v1653 = vpack.c.b16 %v1603, %v1601
    %v1654 = vpack.c.b16 %v1604, %v1602
    %v1655 = vpack.c.b16 %v1607, %v1605
    %v1656 = vpack.c.b16 %v1608, %v1606
    %v1657 = vpack.c.b16 %v1611, %v1609
    %v1658 = vpack.c.b16 %v1612, %v1610
    %v1659 = vpack.c.b16 %v1615, %v1613
    %v1660 = vpack.c.b16 %v1616, %v1614
    %v1661 = vpack.c.b16 %v1619, %v1617
    %v1662 = vpack.c.b16 %v1620, %v1618
    %v1663 = vpack.c.b16 %v1623, %v1621
    %v1664 = vpack.c.b16 %v1624, %v1622
    %v1665 = vpack.c.b16 %v1627, %v1625
    %v1666 = vpack.c.b16 %v1628, %v1626
    %v1667 = vpack.c.b16 %v1631, %v1629
    %v1668 = vpack.c.b16 %v1632, %v1630
    %v1669 = vpack.c.b16 %v1635, %v1633
    %v1670 = vpack.c.b16 %v1636, %v1634
    %v1671 = vpack.c.b16 %v1639, %v1637
    %v1672 = vpack.c.b16 %v1640, %v1638
    %1705 = vmatprep.subr.bf16.mxu0 %v1642
    %1706 = vmatpush1.bf16.msra.mxu0 %v1641
    %1707 = vmatprep.subr.bf16.mxu0 %v1644
    %1708 = vmatpush1.bf16.msra.mxu0 %v1643
    %1709 = vmatprep.subr.bf16.mxu0 %v1646
    %1710 = vmatpush1.bf16.msra.mxu0 %v1645
    %1711 = vmatprep.subr.bf16.mxu0 %v1648
    %1712 = vmatpush1.bf16.msra.mxu0 %v1647
    %1713 = vmatprep.subr.bf16.mxu0 %v1650
    %1714 = vmatpush1.bf16.msra.mxu0 %v1649
    %1715 = vmatprep.subr.bf16.mxu0 %v1652
    %1716 = vmatpush1.bf16.msra.mxu0 %v1651
    %1717 = vmatprep.subr.bf16.mxu0 %v1654
    %1718 = vmatpush1.bf16.msra.mxu0 %v1653
    %1719 = vmatprep.subr.bf16.mxu0 %v1656
    %1720 = vmatpush1.bf16.msra.mxu0 %v1655
    %1721 = vmatprep.subr.bf16.mxu0 %v1658
    %1722 = vmatpush1.bf16.msra.mxu0 %v1657
    %1723 = vmatprep.subr.bf16.mxu0 %v1660
    %1724 = vmatpush1.bf16.msra.mxu0 %v1659
    %1725 = vmatprep.subr.bf16.mxu0 %v1662
    %1726 = vmatpush1.bf16.msra.mxu0 %v1661
    %1727 = vmatprep.subr.bf16.mxu0 %v1664
    %1728 = vmatpush1.bf16.msra.mxu0 %v1663
    %1729 = vmatprep.subr.bf16.mxu0 %v1666
    %1730 = vmatpush1.bf16.msra.mxu0 %v1665
    %1731 = vmatprep.subr.bf16.mxu0 %v1668
    %1732 = vmatpush1.bf16.msra.mxu0 %v1667
    %1733 = vmatprep.subr.bf16.mxu0 %v1670
    %1734 = vmatpush1.bf16.msra.mxu0 %v1669
    %1735 = vmatprep.subr.bf16.mxu0 %v1672
    %1736 = vmatpush1.bf16.msra.mxu0 %v1671
    %1737 = vmatprep.mubr.bf16.mxu0 %v1500
    %1738 = vmatmul.mubr.bf16.gmra.mrb[0].mxu0 %v1499
    %v1739 = vpop.f32.mrb[0].mxu0
    %v1740 = vadd.f32 %v1538, %v1739
    %v1741 = vpop.f32.mrb[0].mxu0
    %v1742 = vadd.f32 %v1542, %v1741
    %v1743 = vpop.f32.mrb[0].mxu0
    %v1744 = vpop.f32.mrb[0].mxu0
    %1745 = vdwg.mxu0
    %v1746 = vmax.f32 %v1740, 0.0
    %v1747 = vmax.f32 %v1742, 0.0
    %v1748 = vpack.c.bf16 %v1746, %v1746
    %v1749 = vpack.c.bf16 %v1747, %v1747
    %v1750 = vld [vmem:[#allocation11] sm:$0xf]
    %v1751 = vld [vmem:[#allocation11 + $0x4] sm:$0xf]
    %v1752 = vld [vmem:[#allocation11 + $0x8] sm:$0xf]
    %v1753 = vld [vmem:[#allocation11 + $0xc] sm:$0xf]
    %v1754 = vld [vmem:[#allocation11 + $0x10] sm:$0xf]
    %v1755 = vld [vmem:[#allocation11 + $0x14] sm:$0xf]
    %v1756 = vld [vmem:[#allocation11 + $0x18] sm:$0xf]
    %v1757 = vld [vmem:[#allocation11 + $0x1c] sm:$0xf]
    %v1758 = vld [vmem:[#allocation11 + $0x20] sm:$0xf]
    %v1759 = vld [vmem:[#allocation11 + $0x24] sm:$0xf]
    %v1760 = vld [vmem:[#allocation11 + $0x28] sm:$0xf]
    %v1761 = vld [vmem:[#allocation11 + $0x2c] sm:$0xf]
    %v1762 = vld [vmem:[#allocation11 + $0x30] sm:$0xf]
    %v1763 = vld [vmem:[#allocation11 + $0x34] sm:$0xf]
    %v1764 = vld [vmem:[#allocation11 + $0x38] sm:$0xf]
    %v1765 = vld [vmem:[#allocation11 + $0x3c] sm:$0xf]
    %v1766 = vld [vmem:[#allocation11 + $0x40] sm:$0xf]
    %v1767 = vld [vmem:[#allocation11 + $0x44] sm:$0xf]
    %v1768 = vld [vmem:[#allocation11 + $0x48] sm:$0xf]
    %v1769 = vld [vmem:[#allocation11 + $0x4c] sm:$0xf]
    %v1770 = vld [vmem:[#allocation11 + $0x50] sm:$0xf]
    %v1771 = vld [vmem:[#allocation11 + $0x54] sm:$0xf]
    %v1772 = vld [vmem:[#allocation11 + $0x58] sm:$0xf]
    %v1773 = vld [vmem:[#allocation11 + $0x5c] sm:$0xf]
    %v1774 = vld [vmem:[#allocation11 + $0x60] sm:$0xf]
    %v1775 = vld [vmem:[#allocation11 + $0x64] sm:$0xf]
    %v1776 = vld [vmem:[#allocation11 + $0x68] sm:$0xf]
    %v1777 = vld [vmem:[#allocation11 + $0x6c] sm:$0xf]
    %v1778 = vld [vmem:[#allocation11 + $0x70] sm:$0xf]
    %v1779 = vld [vmem:[#allocation11 + $0x74] sm:$0xf]
    %v1780 = vld [vmem:[#allocation11 + $0x78] sm:$0xf]
    %v1781 = vld [vmem:[#allocation11 + $0x7c] sm:$0xf]
    %v1782 = vld [vmem:[%s10] sm:$0x1]
    %v1784 = vlaneseq
    %v1785 = vshrl.u32 %v1784, 7
    %v1786 = vsub.s32 0, %v1785
    %v1787 = vrot.slane %v1782, %v1786
    %v1821 = vunpack.c.l.b16 %v1750
    %v1822 = vunpack.c.l.b16 %v1751
    %v1823 = vunpack.c.l.b16 %v1752
    %v1824 = vunpack.c.l.b16 %v1753
    %v1825 = vunpack.c.l.b16 %v1754
    %v1826 = vunpack.c.l.b16 %v1755
    %v1827 = vunpack.c.l.b16 %v1756
    %v1828 = vunpack.c.l.b16 %v1757
    %v1829 = vunpack.c.l.b16 %v1758
    %v1830 = vunpack.c.l.b16 %v1759
    %v1831 = vunpack.c.l.b16 %v1760
    %v1832 = vunpack.c.l.b16 %v1761
    %v1833 = vunpack.c.l.b16 %v1762
    %v1834 = vunpack.c.l.b16 %v1763
    %v1835 = vunpack.c.l.b16 %v1764
    %v1836 = vunpack.c.l.b16 %v1765
    %v1837 = vunpack.c.l.b16 %v1766
    %v1838 = vunpack.c.l.b16 %v1767
    %v1839 = vunpack.c.l.b16 %v1768
    %v1840 = vunpack.c.l.b16 %v1769
    %v1841 = vunpack.c.l.b16 %v1770
    %v1842 = vunpack.c.l.b16 %v1771
    %v1843 = vunpack.c.l.b16 %v1772
    %v1844 = vunpack.c.l.b16 %v1773
    %v1845 = vunpack.c.l.b16 %v1774
    %v1846 = vunpack.c.l.b16 %v1775
    %v1847 = vunpack.c.l.b16 %v1776
    %v1848 = vunpack.c.l.b16 %v1777
    %v1849 = vunpack.c.l.b16 %v1778
    %v1850 = vunpack.c.l.b16 %v1779
    %v1851 = vunpack.c.l.b16 %v1780
    %v1852 = vunpack.c.l.b16 %v1781
    %v1853 = vpack.c.b16 %v1822, %v1821
    %v1854 = vpack.c.b16 %v1824, %v1823
    %v1855 = vpack.c.b16 %v1826, %v1825
    %v1856 = vpack.c.b16 %v1828, %v1827
    %v1857 = vpack.c.b16 %v1830, %v1829
    %v1858 = vpack.c.b16 %v1832, %v1831
    %v1859 = vpack.c.b16 %v1834, %v1833
    %v1860 = vpack.c.b16 %v1836, %v1835
    %v1861 = vpack.c.b16 %v1838, %v1837
    %v1862 = vpack.c.b16 %v1840, %v1839
    %v1863 = vpack.c.b16 %v1842, %v1841
    %v1864 = vpack.c.b16 %v1844, %v1843
    %v1865 = vpack.c.b16 %v1846, %v1845
    %v1866 = vpack.c.b16 %v1848, %v1847
    %v1867 = vpack.c.b16 %v1850, %v1849
    %v1868 = vpack.c.b16 %v1852, %v1851
    %1885 = vmatprep.subr.bf16.mxu0 0
    %1886 = vmatpush1.bf16.msra.mxu0 %v1853
    %1887 = vmatprep.subr.bf16.mxu0 0
    %1888 = vmatpush1.bf16.msra.mxu0 %v1854
    %1889 = vmatprep.subr.bf16.mxu0 0
    %1890 = vmatpush1.bf16.msra.mxu0 %v1855
    %1891 = vmatprep.subr.bf16.mxu0 0
    %1892 = vmatpush1.bf16.msra.mxu0 %v1856
    %1893 = vmatprep.subr.bf16.mxu0 0
    %1894 = vmatpush1.bf16.msra.mxu0 %v1857
    %1895 = vmatprep.subr.bf16.mxu0 0
    %1896 = vmatpush1.bf16.msra.mxu0 %v1858
    %1897 = vmatprep.subr.bf16.mxu0 0
    %1898 = vmatpush1.bf16.msra.mxu0 %v1859
    %1899 = vmatprep.subr.bf16.mxu0 0
    %1900 = vmatpush1.bf16.msra.mxu0 %v1860
    %1901 = vmatprep.subr.bf16.mxu0 0
    %1902 = vmatpush1.bf16.msra.mxu0 %v1861
    %1903 = vmatprep.subr.bf16.mxu0 0
    %1904 = vmatpush1.bf16.msra.mxu0 %v1862
    %1905 = vmatprep.subr.bf16.mxu0 0
    %1906 = vmatpush1.bf16.msra.mxu0 %v1863
    %1907 = vmatprep.subr.bf16.mxu0 0
    %1908 = vmatpush1.bf16.msra.mxu0 %v1864
    %1909 = vmatprep.subr.bf16.mxu0 0
    %1910 = vmatpush1.bf16.msra.mxu0 %v1865
    %1911 = vmatprep.subr.bf16.mxu0 0
    %1912 = vmatpush1.bf16.msra.mxu0 %v1866
    %1913 = vmatprep.subr.bf16.mxu0 0
    %1914 = vmatpush1.bf16.msra.mxu0 %v1867
    %1915 = vmatprep.subr.bf16.mxu0 0
    %1916 = vmatpush1.bf16.msra.mxu0 %v1868
    %1917 = vmatprep.mubr.bf16.mxu0 %v1749
    %1918 = vmatmul.mubr.bf16.gmra.mrb[0].mxu0 %v1748
    %v1919 = vpop.f32.mrb[0].mxu0
    %v1920 = vadd.f32 %v1787, %v1919
    %v1921 = vpop.f32.mrb[0].mxu0
    %v1922 = vpop.f32.mrb[0].mxu0
    %v1923 = vpop.f32.mrb[0].mxu0
    %1924 = vdwg.mxu0
    %v1925 = vmax.f32 %v1920, 0.0
    %v1926 = vpack.c.bf16 %v1925, %v1925
    %v1927 = vld [vmem:[#allocation13] sm:$0xf]
    %v1928 = vld [vmem:[#allocation13 + $0x4] sm:$0xf]
    %v1929 = vld [vmem:[#allocation13 + $0x8] sm:$0xf]
    %v1930 = vld [vmem:[#allocation13 + $0xc] sm:$0xf]
    %v1931 = vld [vmem:[#allocation13 + $0x10] sm:$0xf]
    %v1932 = vld [vmem:[#allocation13 + $0x14] sm:$0xf]
    %v1933 = vld [vmem:[#allocation13 + $0x18] sm:$0xf]
    %v1934 = vld [vmem:[#allocation13 + $0x1c] sm:$0xf]
    %v1935 = vld [vmem:[#allocation13 + $0x20] sm:$0xf]
    %v1936 = vld [vmem:[#allocation13 + $0x24] sm:$0xf]
    %v1937 = vld [vmem:[#allocation13 + $0x28] sm:$0xf]
    %v1938 = vld [vmem:[#allocation13 + $0x2c] sm:$0xf]
    %v1939 = vld [vmem:[#allocation13 + $0x30] sm:$0xf]
    %v1940 = vld [vmem:[#allocation13 + $0x34] sm:$0xf]
    %v1941 = vld [vmem:[#allocation13 + $0x38] sm:$0xf]
    %v1942 = vld [vmem:[#allocation13 + $0x3c] sm:$0xf]
    %v1943 = vld [vmem:[%s12] sm:$0x1]
    %v1945 = vlaneseq
    %v1946 = vshrl.u32 %v1945, 7
    %v1947 = vsub.s32 0, %v1946
    %v1948 = vrot.slane %v1943, %v1947
    %v1966 = vunpack.c.l.b16 %v1927
    %v1967 = vunpack.c.l.b16 %v1928
    %v1968 = vunpack.c.l.b16 %v1929
    %v1969 = vunpack.c.l.b16 %v1930
    %v1970 = vunpack.c.l.b16 %v1931
    %v1971 = vunpack.c.l.b16 %v1932
    %v1972 = vunpack.c.l.b16 %v1933
    %v1973 = vunpack.c.l.b16 %v1934
    %v1974 = vunpack.c.l.b16 %v1935
    %v1975 = vunpack.c.l.b16 %v1936
    %v1976 = vunpack.c.l.b16 %v1937
    %v1977 = vunpack.c.l.b16 %v1938
    %v1978 = vunpack.c.l.b16 %v1939
    %v1979 = vunpack.c.l.b16 %v1940
    %v1980 = vunpack.c.l.b16 %v1941
    %v1981 = vunpack.c.l.b16 %v1942
    %v1982 = vpack.c.b16 %v1967, %v1966
    %v1983 = vpack.c.b16 %v1969, %v1968
    %v1984 = vpack.c.b16 %v1971, %v1970
    %v1985 = vpack.c.b16 %v1973, %v1972
    %v1986 = vpack.c.b16 %v1975, %v1974
    %v1987 = vpack.c.b16 %v1977, %v1976
    %v1988 = vpack.c.b16 %v1979, %v1978
    %v1989 = vpack.c.b16 %v1981, %v1980
    %1998 = vmatprep.subr.bf16.mxu0 0
    %1999 = vmatpush1.bf16.msra.mxu0 %v1982
    %2000 = vmatprep.subr.bf16.mxu0 0
    %2001 = vmatpush1.bf16.msra.mxu0 %v1983
    %2002 = vmatprep.subr.bf16.mxu0 0
    %2003 = vmatpush1.bf16.msra.mxu0 %v1984
    %2004 = vmatprep.subr.bf16.mxu0 0
    %2005 = vmatpush1.bf16.msra.mxu0 %v1985
    %2006 = vmatprep.subr.bf16.mxu0 0
    %2007 = vmatpush1.bf16.msra.mxu0 %v1986
    %2008 = vmatprep.subr.bf16.mxu0 0
    %2009 = vmatpush1.bf16.msra.mxu0 %v1987
    %2010 = vmatprep.subr.bf16.mxu0 0
    %2011 = vmatpush1.bf16.msra.mxu0 %v1988
    %2012 = vmatprep.subr.bf16.mxu0 0
    %2013 = vmatpush1.bf16.msra.mxu0 %v1989
    %2014 = vmatprep.subr.bf16.mxu0 0
    %2015 = vmatpush1.bf16.msra.mxu0 0
    %2016 = vmatprep.subr.bf16.mxu0 0
    %2017 = vmatpush1.bf16.msra.mxu0 0
    %2018 = vmatprep.subr.bf16.mxu0 0
    %2019 = vmatpush1.bf16.msra.mxu0 0
    %2020 = vmatprep.subr.bf16.mxu0 0
    %2021 = vmatpush1.bf16.msra.mxu0 0
    %2022 = vmatprep.subr.bf16.mxu0 0
    %2023 = vmatpush1.bf16.msra.mxu0 0
    %2024 = vmatprep.subr.bf16.mxu0 0
    %2025 = vmatpush1.bf16.msra.mxu0 0
    %2026 = vmatprep.subr.bf16.mxu0 0
    %2027 = vmatpush1.bf16.msra.mxu0 0
    %2028 = vmatprep.subr.bf16.mxu0 0
    %2029 = vmatpush1.bf16.msra.mxu0 0
    %2030 = vmatprep.mubr.bf16.mxu0 0
    %2031 = vmatmul.mubr.bf16.gmra.mrb[0].mxu0 %v1926
    %v2032 = vpop.f32.mrb[0].mxu0
    %v2033 = vadd.f32 %v1948, %v2032
    %v2034 = vpop.f32.mrb[0].mxu0
    %v2035 = vpop.f32.mrb[0].mxu0
    %v2036 = vpop.f32.mrb[0].mxu0
    %2037 = vdwg.mxu0
    %2038 = vst [vmem:[#allocation14] sm:$0xff] %v2033
    // Predicated region
    $region82: #{tpu_custom_call.1} parent=1 // pred_check
      _
    $region83: #{tpu_custom_call.1} parent=1 // pred_check_branch
      %2040 = sbr.rel (0) target = $region85
    $region84: #{tpu_custom_call.1} parent=1 // pred_region
      %s2042 = ssub.s32 128, 128
      %2043 = vsyncadd [#allocation4], %s2042
      %s2045 = sshll.u32 [#allocation14], 4
      %s2046 = int_to_ptr.vmem [resolvable:$true] %s2045
      %2048 = dma.vmem_to_hbm [thread:$0]  %s2046, 128, %s13, [#allocation4]
    $region85: #{tpu_custom_call.1} parent=1 // pred_fallthru
      _
    // Predicated region
    $region86: #{tpu_custom_call.1} parent=1 // pred_check
      _
    $region87: #{tpu_custom_call.1} parent=1 // pred_check_branch
      %2050 = sbr.rel (0) target = $region89
    $region88: #{tpu_custom_call.1} parent=1 // pred_region
      %2051 = dma.done [#allocation4], 128
    $region89: #{tpu_custom_call.1} parent=1 // pred_fallthru
      _
    %2052 = vsyncpa [#allocation3], 1
    %2053 = vsyncpa [#allocation6], 1
    %2054 = vsyncpa [#allocation9], 1
    %2055 = vsyncpa [#allocation12], 1
    %2056 = vsyncpa [#allocation4], 1

</llo_original>
